<compile_context>
chip_gen: v6e
topology: v6e:2x2x1
jax: 0.10.0
libtpu: 0.0.40
codegen_flags: <defaults>
</compile_context>

<pallas_src>
import numpy as np
import jax
import jax.numpy as jnp
from jax.experimental import pallas as pl
from jax.experimental.pallas import tpu as pltpu

EPS = 1e-5
SLOPE = 0.1


# --------------------------------------------------------------------------- #
# host-side constant builders (numpy, tiny)                                    #
# --------------------------------------------------------------------------- #

def _shift_1d(n, off):
    """[n, n] 0/1 matrix: out[i] = in[i + off] (zero outside)."""
    m = np.zeros((n, n), np.float32)
    for i in range(n):
        j = i + off
        if 0 <= j < n:
            m[i, j] = 1.0
    return m


def _pool_1d(n_in, k, s, p):
    n_out = (n_in + 2 * p - k) // s + 1
    m = np.zeros((n_out, n_in), np.float32)
    for i in range(n_out):
        for t in range(k):
            j = i * s + t - p
            if 0 <= j < n_in:
                m[i, j] = 1.0
    return m


def _pool_T(h_in, w_in, k, s, p, n):
    """[n*HWin, n*HWout] so that pooled = F @ P_T for F laid out [C, n*HWin]."""
    P = np.kron(_pool_1d(h_in, k, s, p), _pool_1d(w_in, k, s, p)) / float(k * k)
    return np.kron(np.eye(n, dtype=np.float32), P.T)


def _pool_then_taps_T(h_in, w_in, k, s, p, n, d):
    """[9, n*HWin, n*HWout]: AvgPool(k,s,p) followed by the 3x3 tap shift
    (dilation d, zero pad d) at the pooled resolution, as right-multiplied
    operators.  Used only for the final conv (< 128 lanes of spatial)."""
    PT = _pool_T(h_in, w_in, k, s, p, n)
    h_o = (h_in + 2 * p - k) // s + 1
    w_o = (w_in + 2 * p - k) // s + 1
    mats = []
    for ky in range(3):
        for kx in range(3):
            S = np.kron(_shift_1d(h_o, (ky - 1) * d), _shift_1d(w_o, (kx - 1) * d))
            S_full = np.kron(np.eye(n, dtype=np.float32), S)
            mats.append(PT @ S_full.T)
    return np.stack(mats)


def _tap_mask_rows(h, w, n, d, reps):
    """[9*reps, n*h*w] 0/1 validity masks (tap-major, `reps` identical rows per
    tap) for a 3x3 conv, zero padding = dilation = d, in the [C, N*H*W] layout.
    Also zeroes taps that would wrap across image/batch boundaries."""
    rows = np.zeros((9 * reps, n * h * w), np.float32)
    for ky in range(3):
        for kx in range(3):
            t = ky * 3 + kx
            dh, dw = (ky - 1) * d, (kx - 1) * d
            m = np.zeros((h, w), np.float32)
            m[max(0, -dh):min(h, h - dh), max(0, -dw):min(w, w - dw)] = 1.0
            rows[t * reps:(t + 1) * reps, :] = np.tile(m.reshape(-1), n)[None, :]
    return rows


# --------------------------------------------------------------------------- #
# Pallas kernel                                                                #
# --------------------------------------------------------------------------- #

def _make_kernel(n, h, w, hp1, wp1, d):
    NHW0 = n * h * w
    NHW1 = n * hp1 * wp1

    def _bn_lrelu(F, gamma, beta):
        # training-mode BatchNorm2d: stats over (N, H, W) == the lane axis
        mean = jnp.mean(F, axis=1, keepdims=True)
        cen = F - mean
        var = jnp.mean(cen * cen, axis=1, keepdims=True)      # biased variance
        y = cen * (gamma * jax.lax.rsqrt(var + EPS)) + beta
        return jnp.where(y > 0, y, SLOPE * y)

    def _conv3x3(F, Wcat, Mstack, W_dim, NHW, dil):
        """3x3 conv, stride 1, padding = dilation = dil.
        9 lane-rolls stacked along sublanes, one elementwise mask multiply,
        then ONE MXU matmul with K = 9*Cin (concat-K formulation)."""
        parts = []
        for ky in range(3):
            for kx in range(3):
                delta = (ky - 1) * dil * W_dim + (kx - 1) * dil
                parts.append(F if delta == 0
                             else pltpu.roll(F, (-delta) % NHW, axis=1))
        S = jnp.concatenate(parts, axis=0) * Mstack            # [9*Cin, NHW]
        return jnp.dot(Wcat, S, preferred_element_type=jnp.float32)

    def kernel(x_ref, wc1_ref, wc234_ref, wsk_ref, prm_ref,
               m1_ref, m23_ref, p1t_ref, pskt_ref, p2tt_ref, out_ref):
        def col(i):                              # per-channel gamma/beta column
            return prm_ref[:, i:i + 1]

        x0 = x_ref[...]

        # ---- skip: Conv1x1 -> BN -> LeakyReLU -> AvgPool(4, 4, 1) ---------- #
        # (conv bias omitted: it cancels exactly under the train-mode BN mean)
        sk = jnp.dot(wsk_ref[...], x0, preferred_element_type=jnp.float32)
        sk = _bn_lrelu(sk, col(8), col(9))
        sk = jnp.dot(sk, pskt_ref[...], preferred_element_type=jnp.float32)

        # ---- downsample1 ---------------------------------------------------- #
        a = _conv3x3(x0, wc1_ref[...], m1_ref[...], w, NHW0, 1)   # Conv3x3 pad 1
        a = _bn_lrelu(a, col(0), col(1))
        a = jnp.dot(a, p1t_ref[...], preferred_element_type=jnp.float32)  # AvgPool(4,2,1)
        m23 = m23_ref[...]
        a = _conv3x3(a, wc234_ref[0], m23, wp1, NHW1, d)          # Conv3x3 pad=dil=d
        a = _bn_lrelu(a, col(2), col(3))

        # ---- downsample2 ---------------------------------------------------- #
        a = _conv3x3(a, wc234_ref[1], m23, wp1, NHW1, d)
        a = _bn_lrelu(a, col(4), col(5))
        # AvgPool(4,2,1) + last Conv3x3 fused through the p2tt operators:
        # 9 pooled-tap matmuls stacked along sublanes, one K=9*Cout channel mix.
        ps = jnp.concatenate(
            [jnp.dot(a, p2tt_ref[t], preferred_element_type=jnp.float32)
             for t in range(9)], axis=0)                          # [9*Cout, 32]
        a = jnp.dot(wc234_ref[2], ps, preferred_element_type=jnp.float32)
        a = _bn_lrelu(a, col(6), col(7))

        out_ref[...] = a + sk                                     # residual add

    return kernel


# --------------------------------------------------------------------------- #
# JAX wrapper                                                                  #
# --------------------------------------------------------------------------- #

def init_params(key, cin, cout):
    ks = jax.random.split(key, 20)

    def conv(kw, kb, ci, co, k):
        w_ = 0.2 * jax.random.normal(kw, (co, ci, k, k), jnp.float32)
        b_ = 0.1 * jax.random.normal(kb, (co,), jnp.float32)
        return w_, b_

    def bn(kg, kb, c):
        g = 1.0 + 0.1 * jax.random.normal(kg, (c,), jnp.float32)
        b = 0.1 * jax.random.normal(kb, (c,), jnp.float32)
        return g, b

    p = {}
    p['w1'], p['c1b'] = conv(ks[0], ks[1], cin, cout, 3)
    p['g1'], p['q1'] = bn(ks[2], ks[3], cout)
    p['w2'], p['c2b'] = conv(ks[4], ks[5], cout, cout, 3)
    p['g2'], p['q2'] = bn(ks[6], ks[7], cout)
    p['w3'], p['c3b'] = conv(ks[8], ks[9], cout, cout, 3)
    p['g3'], p['q3'] = bn(ks[10], ks[11], cout)
    p['w4'], p['c4b'] = conv(ks[12], ks[13], cout, cout, 3)
    p['g4'], p['q4'] = bn(ks[14], ks[15], cout)
    p['wsk'], p['cskb'] = conv(ks[16], ks[17], cin, cout, 1)
    p['gsk'], p['qsk'] = bn(ks[18], ks[19], cout)
    return p


def conv_residual_encoder_block(params, x, dilation_rate=1):
    n, cin, h, w = x.shape
    cout = params['w1'].shape[0]
    d = int(dilation_rate)

    hp1, wp1 = (h + 2 - 4) // 2 + 1, (w + 2 - 4) // 2 + 1      # after pool1
    hp2, wp2 = (hp1 + 2 - 4) // 2 + 1, (wp1 + 2 - 4) // 2 + 1  # after pool2
    hs, ws = (h + 2 - 4) // 4 + 1, (w + 2 - 4) // 4 + 1        # skip pool
    assert (hp2, wp2) == (hs, ws), "residual shapes must match"

    # activations NCHW -> [Cin, N*H*W]  (channels on sublanes, lane-dense)
    f0 = jnp.transpose(x, (1, 0, 2, 3)).reshape(cin, n * h * w).astype(jnp.float32)

    # conv weights in concat-K form: [Cout, 9*Cin], columns tap-major then ci
    def wcat(wk):
        co, ci = wk.shape[0], wk.shape[1]
        return jnp.transpose(wk, (0, 2, 3, 1)).reshape(co, 9 * ci)

    wc1 = wcat(params['w1'])                                   # [cout, 9*cin]
    wc234 = jnp.stack([wcat(params['w2']), wcat(params['w3']),
                       wcat(params['w4'])])                    # [3, cout, 9*cout]
    wskm = params['wsk'][:, :, 0, 0]                           # [cout, cin]

    # BN gamma/beta packed into one [cout, 10] table
    # (conv biases intentionally not passed: they cancel under train-mode BN)
    prm = jnp.stack([params[k] for k in
                     ('g1', 'q1', 'g2', 'q2', 'g3', 'q3',
                      'g4', 'q4', 'gsk', 'qsk')], axis=1)

    # precomputed tap-validity masks (0/1) and pooling operators (0 / 1/16)
    m1 = jnp.asarray(_tap_mask_rows(h, w, n, 1, cin))          # [9*cin,  NHW0]
    m23 = jnp.asarray(_tap_mask_rows(hp1, wp1, n, d, cout))    # [9*cout, NHW1]
    p1t = jnp.asarray(_pool_T(h, w, 4, 2, 1, n))               # [NHW0, NHW1]
    pskt = jnp.asarray(_pool_T(h, w, 4, 4, 1, n))              # [NHW0, N*hs*ws]
    p2tt = jnp.asarray(_pool_then_taps_T(hp1, wp1, 4, 2, 1, n, d))  # [9, NHW1, .]

    kernel = _make_kernel(n, h, w, hp1, wp1, d)
    out = pl.pallas_call(
        kernel,
        out_shape=jax.ShapeDtypeStruct((cout, n * hp2 * wp2), jnp.float32),
        in_specs=[pl.BlockSpec(memory_space=pltpu.MemorySpace.VMEM)
                  for _ in range(10)],
        out_specs=pl.BlockSpec(memory_space=pltpu.MemorySpace.VMEM),
    )(f0, wc1, wc234, wskm, prm, m1, m23, p1t, pskt, p2tt)

    # [Cout, N*Ho*Wo] -> NCHW
    return jnp.transpose(out.reshape(cout, n, hp2, wp2), (1, 0, 2, 3))


# --------------------------------------------------------------------------- #
# pure-JAX reference (keeps the conv biases, proving the cancellation)         #
# --------------------------------------------------------------------------- #

def _ref_forward(params, x, d=1):
    def conv(x_, w_, b_, pad, dil):
        y = jax.lax.conv_general_dilated(
            x_, w_, (1, 1), [(pad, pad), (pad, pad)], rhs_dilation=(dil, dil),
            dimension_numbers=('NCHW', 'OIHW', 'NCHW'),
            precision=jax.lax.Precision.HIGHEST)
        return y + b_[None, :, None, None]

    def bn_lrelu(x_, g, q):
        mean = jnp.mean(x_, axis=(0, 2, 3), keepdims=True)
        cen = x_ - mean
        var = jnp.mean(cen * cen, axis=(0, 2, 3), keepdims=True)
        y = cen * (g[None, :, None, None] * jax.lax.rsqrt(var + EPS)) \
            + q[None, :, None, None]
        return jnp.where(y > 0, y, SLOPE * y)

    def avgpool(x_, k, s, p):
        xp = jnp.pad(x_, ((0, 0), (0, 0), (p, p), (p, p)))
        y = jax.lax.reduce_window(xp, 0.0, jax.lax.add,
                                  (1, 1, k, k), (1, 1, s, s), 'VALID')
        return y / float(k * k)

    sk = conv(x, params['wsk'], params['cskb'], 0, 1)
    sk = bn_lrelu(sk, params['gsk'], params['qsk'])
    sk = avgpool(sk, 4, 4, 1)

    a = conv(x, params['w1'], params['c1b'], 1, 1)
    a = bn_lrelu(a, params['g1'], params['q1'])
    a = avgpool(a, 4, 2, 1)
    a = conv(a, params['w2'], params['c2b'], d, d)
    a = bn_lrelu(a, params['g2'], params['q2'])

    a = conv(a, params['w3'], params['c3b'], d, d)
    a = bn_lrelu(a, params['g3'], params['q3'])
    a = avgpool(a, 4, 2, 1)
    a = conv(a, params['w4'], params['c4b'], d, d)
    a = bn_lrelu(a, params['g4'], params['q4'])
    return a + sk


# --------------------------------------------------------------------------- #
# main                                                                         #
# --------------------------------------------------------------------------- #

if __name__ == "__main__":
    key = jax.random.PRNGKey(0)
    kx, kp = jax.random.split(key)

    N, CIN, COUT, H, W = 2, 4, 8, 16, 16
    x = jax.random.normal(kx, (N, CIN, H, W), jnp.float32)
    params = init_params(kp, CIN, COUT)

    out = conv_residual_encoder_block(params, x, dilation_rate=1)
    out = jax.block_until_ready(out)
    assert out.shape == (N, COUT, 4, 4), out.shape

    ref = _ref_forward(params, x, d=1)
    np.testing.assert_allclose(np.asarray(out), np.asarray(ref),
                               rtol=2e-2, atol=2e-2)
    print("KERNEL_OK")
</pallas_src>

<mosaic_0001>
module attributes {stable_mosaic.version = 11 : i64} {
  func.func @kernel(%arg0: memref<4x512xf32, #tpu.memory_space<vmem>>, %arg1: memref<8x36xf32, #tpu.memory_space<vmem>>, %arg2: memref<3x8x72xf32, #tpu.memory_space<vmem>>, %arg3: memref<8x4xf32, #tpu.memory_space<vmem>>, %arg4: memref<8x10xf32, #tpu.memory_space<vmem>>, %arg5: memref<36x512xf32, #tpu.memory_space<vmem>>, %arg6: memref<72x128xf32, #tpu.memory_space<vmem>>, %arg7: memref<512x128xf32, #tpu.memory_space<vmem>>, %arg8: memref<512x32xf32, #tpu.memory_space<vmem>>, %arg9: memref<9x128x32xf32, #tpu.memory_space<vmem>>, %arg10: memref<8x32xf32, #tpu.memory_space<vmem>>) attributes {dimension_semantics = [], scalar_prefetch = 0 : i64, scratch_operands = 0 : i64, tpu.core_type = #tpu.core_type<tc>} {
    %c0 = arith.constant 0 : index
    %c0_0 = arith.constant 0 : index
    %0 = vector.load %arg0[%c0, %c0_0] : memref<4x512xf32, #tpu.memory_space<vmem>>, vector<4x512xf32>
    %c0_1 = arith.constant 0 : index
    %c0_2 = arith.constant 0 : index
    %1 = vector.load %arg3[%c0_1, %c0_2] : memref<8x4xf32, #tpu.memory_space<vmem>>, vector<8x4xf32>
    %cst = arith.constant dense<0.000000e+00> : vector<8x512xf32>
    %2 = tpu.matmul %1, %0, %cst {dimension_numbers = #tpu.dot_dimension_numbers<[1], [0], [0], [1], [0, 0, 1, 1], [], []>} : vector<8x4xf32>, vector<4x512xf32>, vector<8x512xf32> -> vector<8x512xf32>
    %c0_3 = arith.constant 0 : index
    %c8 = arith.constant 8 : index
    %3 = vector.load %arg4[%c0_3, %c8] : memref<8x10xf32, #tpu.memory_space<vmem>>, vector<8x1xf32>
    %c0_4 = arith.constant 0 : index
    %c9 = arith.constant 9 : index
    %4 = vector.load %arg4[%c0_4, %c9] : memref<8x10xf32, #tpu.memory_space<vmem>>, vector<8x1xf32>
    %cst_5 = arith.constant dense<0.000000e+00> : vector<8xf32>
    %5 = vector.multi_reduction <add>, %2, %cst_5 [1] : vector<8x512xf32> to vector<8xf32>
    %6 = vector.shape_cast %5 : vector<8xf32> to vector<8x1xf32>
    %cst_6 = arith.constant 5.120000e+02 : f32
    %7 = vector.broadcast %cst_6 : f32 to vector<8x1xf32>
    %8 = arith.divf %6, %7 : vector<8x1xf32>
    %9 = vector.broadcast %8 : vector<8x1xf32> to vector<8x512xf32>
    %10 = arith.subf %2, %9 : vector<8x512xf32>
    %11 = arith.mulf %10, %10 : vector<8x512xf32>
    %cst_7 = arith.constant dense<0.000000e+00> : vector<8xf32>
    %12 = vector.multi_reduction <add>, %11, %cst_7 [1] : vector<8x512xf32> to vector<8xf32>
    %13 = vector.shape_cast %12 : vector<8xf32> to vector<8x1xf32>
    %cst_8 = arith.constant 5.120000e+02 : f32
    %14 = vector.broadcast %cst_8 : f32 to vector<8x1xf32>
    %15 = arith.divf %13, %14 : vector<8x1xf32>
    %cst_9 = arith.constant 9.99999974E-6 : f32
    %16 = vector.broadcast %cst_9 : f32 to vector<8x1xf32>
    %17 = arith.addf %15, %16 : vector<8x1xf32>
    %18 = math.rsqrt %17 : vector<8x1xf32>
    %19 = arith.mulf %3, %18 : vector<8x1xf32>
    %20 = vector.broadcast %19 : vector<8x1xf32> to vector<8x512xf32>
    %21 = arith.mulf %10, %20 : vector<8x512xf32>
    %22 = vector.broadcast %4 : vector<8x1xf32> to vector<8x512xf32>
    %23 = arith.addf %21, %22 : vector<8x512xf32>
    %cst_10 = arith.constant 0.000000e+00 : f32
    %24 = vector.broadcast %cst_10 : f32 to vector<8x512xf32>
    %25 = arith.cmpf ogt, %23, %24 : vector<8x512xf32>
    %cst_11 = arith.constant 1.000000e-01 : f32
    %26 = vector.broadcast %cst_11 : f32 to vector<8x512xf32>
    %27 = arith.mulf %26, %23 : vector<8x512xf32>
    %28 = arith.select %25, %23, %27 : vector<8x512xi1>, vector<8x512xf32>
    %c0_12 = arith.constant 0 : index
    %c0_13 = arith.constant 0 : index
    %29 = vector.load %arg8[%c0_12, %c0_13] : memref<512x32xf32, #tpu.memory_space<vmem>>, vector<512x32xf32>
    %cst_14 = arith.constant dense<0.000000e+00> : vector<8x32xf32>
    %30 = tpu.matmul %28, %29, %cst_14 {dimension_numbers = #tpu.dot_dimension_numbers<[1], [0], [0], [1], [0, 0, 1, 1], [], []>} : vector<8x512xf32>, vector<512x32xf32>, vector<8x32xf32> -> vector<8x32xf32>
    %c0_15 = arith.constant 0 : index
    %c0_16 = arith.constant 0 : index
    %31 = vector.load %arg1[%c0_15, %c0_16] : memref<8x36xf32, #tpu.memory_space<vmem>>, vector<8x36xf32>
    %c0_17 = arith.constant 0 : index
    %c0_18 = arith.constant 0 : index
    %32 = vector.load %arg5[%c0_17, %c0_18] : memref<36x512xf32, #tpu.memory_space<vmem>>, vector<36x512xf32>
    %c17_i32 = arith.constant 17 : i32
    %33 = tpu.dynamic_rotate %0 by %c17_i32 dim 1 : vector<4x512xf32>, i32 -> vector<4x512xf32>
    %c16_i32 = arith.constant 16 : i32
    %34 = tpu.dynamic_rotate %0 by %c16_i32 dim 1 : vector<4x512xf32>, i32 -> vector<4x512xf32>
    %c15_i32 = arith.constant 15 : i32
    %35 = tpu.dynamic_rotate %0 by %c15_i32 dim 1 : vector<4x512xf32>, i32 -> vector<4x512xf32>
    %c1_i32 = arith.constant 1 : i32
    %36 = tpu.dynamic_rotate %0 by %c1_i32 dim 1 : vector<4x512xf32>, i32 -> vector<4x512xf32>
    %c511_i32 = arith.constant 511 : i32
    %37 = tpu.dynamic_rotate %0 by %c511_i32 dim 1 : vector<4x512xf32>, i32 -> vector<4x512xf32>
    %c497_i32 = arith.constant 497 : i32
    %38 = tpu.dynamic_rotate %0 by %c497_i32 dim 1 : vector<4x512xf32>, i32 -> vector<4x512xf32>
    %c496_i32 = arith.constant 496 : i32
    %39 = tpu.dynamic_rotate %0 by %c496_i32 dim 1 : vector<4x512xf32>, i32 -> vector<4x512xf32>
    %c495_i32 = arith.constant 495 : i32
    %40 = tpu.dynamic_rotate %0 by %c495_i32 dim 1 : vector<4x512xf32>, i32 -> vector<4x512xf32>
    %41 = tpu.concatenate %33, %34, %35, %36, %0, %37, %38, %39, %40 in 0 : vector<4x512xf32>, vector<4x512xf32>, vector<4x512xf32>, vector<4x512xf32>, vector<4x512xf32>, vector<4x512xf32>, vector<4x512xf32>, vector<4x512xf32>, vector<4x512xf32> -> vector<36x512xf32>
    %42 = arith.mulf %41, %32 : vector<36x512xf32>
    %cst_19 = arith.constant dense<0.000000e+00> : vector<8x512xf32>
    %43 = tpu.matmul %31, %42, %cst_19 {dimension_numbers = #tpu.dot_dimension_numbers<[1], [0], [0], [1], [0, 0, 1, 1], [], []>} : vector<8x36xf32>, vector<36x512xf32>, vector<8x512xf32> -> vector<8x512xf32>
    %c0_20 = arith.constant 0 : index
    %c0_21 = arith.constant 0 : index
    %44 = vector.load %arg4[%c0_20, %c0_21] : memref<8x10xf32, #tpu.memory_space<vmem>>, vector<8x1xf32>
    %c0_22 = arith.constant 0 : index
    %c1 = arith.constant 1 : index
    %45 = vector.load %arg4[%c0_22, %c1] : memref<8x10xf32, #tpu.memory_space<vmem>>, vector<8x1xf32>
    %cst_23 = arith.constant dense<0.000000e+00> : vector<8xf32>
    %46 = vector.multi_reduction <add>, %43, %cst_23 [1] : vector<8x512xf32> to vector<8xf32>
    %47 = vector.shape_cast %46 : vector<8xf32> to vector<8x1xf32>
    %cst_24 = arith.constant 5.120000e+02 : f32
    %48 = vector.broadcast %cst_24 : f32 to vector<8x1xf32>
    %49 = arith.divf %47, %48 : vector<8x1xf32>
    %50 = vector.broadcast %49 : vector<8x1xf32> to vector<8x512xf32>
    %51 = arith.subf %43, %50 : vector<8x512xf32>
    %52 = arith.mulf %51, %51 : vector<8x512xf32>
    %cst_25 = arith.constant dense<0.000000e+00> : vector<8xf32>
    %53 = vector.multi_reduction <add>, %52, %cst_25 [1] : vector<8x512xf32> to vector<8xf32>
    %54 = vector.shape_cast %53 : vector<8xf32> to vector<8x1xf32>
    %cst_26 = arith.constant 5.120000e+02 : f32
    %55 = vector.broadcast %cst_26 : f32 to vector<8x1xf32>
    %56 = arith.divf %54, %55 : vector<8x1xf32>
    %cst_27 = arith.constant 9.99999974E-6 : f32
    %57 = vector.broadcast %cst_27 : f32 to vector<8x1xf32>
    %58 = arith.addf %56, %57 : vector<8x1xf32>
    %59 = math.rsqrt %58 : vector<8x1xf32>
    %60 = arith.mulf %44, %59 : vector<8x1xf32>
    %61 = vector.broadcast %60 : vector<8x1xf32> to vector<8x512xf32>
    %62 = arith.mulf %51, %61 : vector<8x512xf32>
    %63 = vector.broadcast %45 : vector<8x1xf32> to vector<8x512xf32>
    %64 = arith.addf %62, %63 : vector<8x512xf32>
    %cst_28 = arith.constant 0.000000e+00 : f32
    %65 = vector.broadcast %cst_28 : f32 to vector<8x512xf32>
    %66 = arith.cmpf ogt, %64, %65 : vector<8x512xf32>
    %cst_29 = arith.constant 1.000000e-01 : f32
    %67 = vector.broadcast %cst_29 : f32 to vector<8x512xf32>
    %68 = arith.mulf %67, %64 : vector<8x512xf32>
    %69 = arith.select %66, %64, %68 : vector<8x512xi1>, vector<8x512xf32>
    %c0_30 = arith.constant 0 : index
    %c0_31 = arith.constant 0 : index
    %70 = vector.load %arg7[%c0_30, %c0_31] : memref<512x128xf32, #tpu.memory_space<vmem>>, vector<512x128xf32>
    %cst_32 = arith.constant dense<0.000000e+00> : vector<8x128xf32>
    %71 = tpu.matmul %69, %70, %cst_32 {dimension_numbers = #tpu.dot_dimension_numbers<[1], [0], [0], [1], [0, 0, 1, 1], [], []>} : vector<8x512xf32>, vector<512x128xf32>, vector<8x128xf32> -> vector<8x128xf32>
    %c0_33 = arith.constant 0 : index
    %c0_34 = arith.constant 0 : index
    %72 = vector.load %arg6[%c0_33, %c0_34] : memref<72x128xf32, #tpu.memory_space<vmem>>, vector<72x128xf32>
    %c0_35 = arith.constant 0 : index
    %c0_36 = arith.constant 0 : index
    %c0_37 = arith.constant 0 : index
    %73 = vector.load %arg2[%c0_35, %c0_36, %c0_37] : memref<3x8x72xf32, #tpu.memory_space<vmem>>, vector<1x8x72xf32>
    %74 = vector.shape_cast %73 : vector<1x8x72xf32> to vector<8x72xf32>
    %c9_i32 = arith.constant 9 : i32
    %75 = tpu.dynamic_rotate %71 by %c9_i32 dim 1 : vector<8x128xf32>, i32 -> vector<8x128xf32>
    %c8_i32 = arith.constant 8 : i32
    %76 = tpu.dynamic_rotate %71 by %c8_i32 dim 1 : vector<8x128xf32>, i32 -> vector<8x128xf32>
    %c7_i32 = arith.constant 7 : i32
    %77 = tpu.dynamic_rotate %71 by %c7_i32 dim 1 : vector<8x128xf32>, i32 -> vector<8x128xf32>
    %c1_i32_38 = arith.constant 1 : i32
    %78 = tpu.dynamic_rotate %71 by %c1_i32_38 dim 1 : vector<8x128xf32>, i32 -> vector<8x128xf32>
    %c127_i32 = arith.constant 127 : i32
    %79 = tpu.dynamic_rotate %71 by %c127_i32 dim 1 : vector<8x128xf32>, i32 -> vector<8x128xf32>
    %c121_i32 = arith.constant 121 : i32
    %80 = tpu.dynamic_rotate %71 by %c121_i32 dim 1 : vector<8x128xf32>, i32 -> vector<8x128xf32>
    %c120_i32 = arith.constant 120 : i32
    %81 = tpu.dynamic_rotate %71 by %c120_i32 dim 1 : vector<8x128xf32>, i32 -> vector<8x128xf32>
    %c119_i32 = arith.constant 119 : i32
    %82 = tpu.dynamic_rotate %71 by %c119_i32 dim 1 : vector<8x128xf32>, i32 -> vector<8x128xf32>
    %83 = tpu.concatenate %75, %76, %77, %78, %71, %79, %80, %81, %82 in 0 : vector<8x128xf32>, vector<8x128xf32>, vector<8x128xf32>, vector<8x128xf32>, vector<8x128xf32>, vector<8x128xf32>, vector<8x128xf32>, vector<8x128xf32>, vector<8x128xf32> -> vector<72x128xf32>
    %84 = arith.mulf %83, %72 : vector<72x128xf32>
    %cst_39 = arith.constant dense<0.000000e+00> : vector<8x128xf32>
    %85 = tpu.matmul %74, %84, %cst_39 {dimension_numbers = #tpu.dot_dimension_numbers<[1], [0], [0], [1], [0, 0, 1, 1], [], []>} : vector<8x72xf32>, vector<72x128xf32>, vector<8x128xf32> -> vector<8x128xf32>
    %c0_40 = arith.constant 0 : index
    %c2 = arith.constant 2 : index
    %86 = vector.load %arg4[%c0_40, %c2] : memref<8x10xf32, #tpu.memory_space<vmem>>, vector<8x1xf32>
    %c0_41 = arith.constant 0 : index
    %c3 = arith.constant 3 : index
    %87 = vector.load %arg4[%c0_41, %c3] : memref<8x10xf32, #tpu.memory_space<vmem>>, vector<8x1xf32>
    %cst_42 = arith.constant dense<0.000000e+00> : vector<8xf32>
    %88 = vector.multi_reduction <add>, %85, %cst_42 [1] : vector<8x128xf32> to vector<8xf32>
    %89 = vector.shape_cast %88 : vector<8xf32> to vector<8x1xf32>
    %cst_43 = arith.constant 1.280000e+02 : f32
    %90 = vector.broadcast %cst_43 : f32 to vector<8x1xf32>
    %91 = arith.divf %89, %90 : vector<8x1xf32>
    %92 = vector.broadcast %91 : vector<8x1xf32> to vector<8x128xf32>
    %93 = arith.subf %85, %92 : vector<8x128xf32>
    %94 = arith.mulf %93, %93 : vector<8x128xf32>
    %cst_44 = arith.constant dense<0.000000e+00> : vector<8xf32>
    %95 = vector.multi_reduction <add>, %94, %cst_44 [1] : vector<8x128xf32> to vector<8xf32>
    %96 = vector.shape_cast %95 : vector<8xf32> to vector<8x1xf32>
    %cst_45 = arith.constant 1.280000e+02 : f32
    %97 = vector.broadcast %cst_45 : f32 to vector<8x1xf32>
    %98 = arith.divf %96, %97 : vector<8x1xf32>
    %cst_46 = arith.constant 9.99999974E-6 : f32
    %99 = vector.broadcast %cst_46 : f32 to vector<8x1xf32>
    %100 = arith.addf %98, %99 : vector<8x1xf32>
    %101 = math.rsqrt %100 : vector<8x1xf32>
    %102 = arith.mulf %86, %101 : vector<8x1xf32>
    %103 = vector.broadcast %102 : vector<8x1xf32> to vector<8x128xf32>
    %104 = arith.mulf %93, %103 : vector<8x128xf32>
    %105 = vector.broadcast %87 : vector<8x1xf32> to vector<8x128xf32>
    %106 = arith.addf %104, %105 : vector<8x128xf32>
    %cst_47 = arith.constant 0.000000e+00 : f32
    %107 = vector.broadcast %cst_47 : f32 to vector<8x128xf32>
    %108 = arith.cmpf ogt, %106, %107 : vector<8x128xf32>
    %cst_48 = arith.constant 1.000000e-01 : f32
    %109 = vector.broadcast %cst_48 : f32 to vector<8x128xf32>
    %110 = arith.mulf %109, %106 : vector<8x128xf32>
    %111 = arith.select %108, %106, %110 : vector<8x128xi1>, vector<8x128xf32>
    %c1_49 = arith.constant 1 : index
    %c0_50 = arith.constant 0 : index
    %c0_51 = arith.constant 0 : index
    %112 = vector.load %arg2[%c1_49, %c0_50, %c0_51] : memref<3x8x72xf32, #tpu.memory_space<vmem>>, vector<1x8x72xf32>
    %113 = vector.shape_cast %112 : vector<1x8x72xf32> to vector<8x72xf32>
    %c9_i32_52 = arith.constant 9 : i32
    %114 = tpu.dynamic_rotate %111 by %c9_i32_52 dim 1 : vector<8x128xf32>, i32 -> vector<8x128xf32>
    %c8_i32_53 = arith.constant 8 : i32
    %115 = tpu.dynamic_rotate %111 by %c8_i32_53 dim 1 : vector<8x128xf32>, i32 -> vector<8x128xf32>
    %c7_i32_54 = arith.constant 7 : i32
    %116 = tpu.dynamic_rotate %111 by %c7_i32_54 dim 1 : vector<8x128xf32>, i32 -> vector<8x128xf32>
    %c1_i32_55 = arith.constant 1 : i32
    %117 = tpu.dynamic_rotate %111 by %c1_i32_55 dim 1 : vector<8x128xf32>, i32 -> vector<8x128xf32>
    %c127_i32_56 = arith.constant 127 : i32
    %118 = tpu.dynamic_rotate %111 by %c127_i32_56 dim 1 : vector<8x128xf32>, i32 -> vector<8x128xf32>
    %c121_i32_57 = arith.constant 121 : i32
    %119 = tpu.dynamic_rotate %111 by %c121_i32_57 dim 1 : vector<8x128xf32>, i32 -> vector<8x128xf32>
    %c120_i32_58 = arith.constant 120 : i32
    %120 = tpu.dynamic_rotate %111 by %c120_i32_58 dim 1 : vector<8x128xf32>, i32 -> vector<8x128xf32>
    %c119_i32_59 = arith.constant 119 : i32
    %121 = tpu.dynamic_rotate %111 by %c119_i32_59 dim 1 : vector<8x128xf32>, i32 -> vector<8x128xf32>
    %122 = tpu.concatenate %114, %115, %116, %117, %111, %118, %119, %120, %121 in 0 : vector<8x128xf32>, vector<8x128xf32>, vector<8x128xf32>, vector<8x128xf32>, vector<8x128xf32>, vector<8x128xf32>, vector<8x128xf32>, vector<8x128xf32>, vector<8x128xf32> -> vector<72x128xf32>
    %123 = arith.mulf %122, %72 : vector<72x128xf32>
    %cst_60 = arith.constant dense<0.000000e+00> : vector<8x128xf32>
    %124 = tpu.matmul %113, %123, %cst_60 {dimension_numbers = #tpu.dot_dimension_numbers<[1], [0], [0], [1], [0, 0, 1, 1], [], []>} : vector<8x72xf32>, vector<72x128xf32>, vector<8x128xf32> -> vector<8x128xf32>
    %c0_61 = arith.constant 0 : index
    %c4 = arith.constant 4 : index
    %125 = vector.load %arg4[%c0_61, %c4] : memref<8x10xf32, #tpu.memory_space<vmem>>, vector<8x1xf32>
    %c0_62 = arith.constant 0 : index
    %c5 = arith.constant 5 : index
    %126 = vector.load %arg4[%c0_62, %c5] : memref<8x10xf32, #tpu.memory_space<vmem>>, vector<8x1xf32>
    %cst_63 = arith.constant dense<0.000000e+00> : vector<8xf32>
    %127 = vector.multi_reduction <add>, %124, %cst_63 [1] : vector<8x128xf32> to vector<8xf32>
    %128 = vector.shape_cast %127 : vector<8xf32> to vector<8x1xf32>
    %cst_64 = arith.constant 1.280000e+02 : f32
    %129 = vector.broadcast %cst_64 : f32 to vector<8x1xf32>
    %130 = arith.divf %128, %129 : vector<8x1xf32>
    %131 = vector.broadcast %130 : vector<8x1xf32> to vector<8x128xf32>
    %132 = arith.subf %124, %131 : vector<8x128xf32>
    %133 = arith.mulf %132, %132 : vector<8x128xf32>
    %cst_65 = arith.constant dense<0.000000e+00> : vector<8xf32>
    %134 = vector.multi_reduction <add>, %133, %cst_65 [1] : vector<8x128xf32> to vector<8xf32>
    %135 = vector.shape_cast %134 : vector<8xf32> to vector<8x1xf32>
    %cst_66 = arith.constant 1.280000e+02 : f32
    %136 = vector.broadcast %cst_66 : f32 to vector<8x1xf32>
    %137 = arith.divf %135, %136 : vector<8x1xf32>
    %cst_67 = arith.constant 9.99999974E-6 : f32
    %138 = vector.broadcast %cst_67 : f32 to vector<8x1xf32>
    %139 = arith.addf %137, %138 : vector<8x1xf32>
    %140 = math.rsqrt %139 : vector<8x1xf32>
    %141 = arith.mulf %125, %140 : vector<8x1xf32>
    %142 = vector.broadcast %141 : vector<8x1xf32> to vector<8x128xf32>
    %143 = arith.mulf %132, %142 : vector<8x128xf32>
    %144 = vector.broadcast %126 : vector<8x1xf32> to vector<8x128xf32>
    %145 = arith.addf %143, %144 : vector<8x128xf32>
    %cst_68 = arith.constant 0.000000e+00 : f32
    %146 = vector.broadcast %cst_68 : f32 to vector<8x128xf32>
    %147 = arith.cmpf ogt, %145, %146 : vector<8x128xf32>
    %cst_69 = arith.constant 1.000000e-01 : f32
    %148 = vector.broadcast %cst_69 : f32 to vector<8x128xf32>
    %149 = arith.mulf %148, %145 : vector<8x128xf32>
    %150 = arith.select %147, %145, %149 : vector<8x128xi1>, vector<8x128xf32>
    %c0_70 = arith.constant 0 : index
    %c0_71 = arith.constant 0 : index
    %c0_72 = arith.constant 0 : index
    %151 = vector.load %arg9[%c0_70, %c0_71, %c0_72] : memref<9x128x32xf32, #tpu.memory_space<vmem>>, vector<1x128x32xf32>
    %152 = vector.shape_cast %151 : vector<1x128x32xf32> to vector<128x32xf32>
    %cst_73 = arith.constant dense<0.000000e+00> : vector<8x32xf32>
    %153 = tpu.matmul %150, %152, %cst_73 {dimension_numbers = #tpu.dot_dimension_numbers<[1], [0], [0], [1], [0, 0, 1, 1], [], []>} : vector<8x128xf32>, vector<128x32xf32>, vector<8x32xf32> -> vector<8x32xf32>
    %c1_74 = arith.constant 1 : index
    %c0_75 = arith.constant 0 : index
    %c0_76 = arith.constant 0 : index
    %154 = vector.load %arg9[%c1_74, %c0_75, %c0_76] : memref<9x128x32xf32, #tpu.memory_space<vmem>>, vector<1x128x32xf32>
    %155 = vector.shape_cast %154 : vector<1x128x32xf32> to vector<128x32xf32>
    %cst_77 = arith.constant dense<0.000000e+00> : vector<8x32xf32>
    %156 = tpu.matmul %150, %155, %cst_77 {dimension_numbers = #tpu.dot_dimension_numbers<[1], [0], [0], [1], [0, 0, 1, 1], [], []>} : vector<8x128xf32>, vector<128x32xf32>, vector<8x32xf32> -> vector<8x32xf32>
    %c2_78 = arith.constant 2 : index
    %c0_79 = arith.constant 0 : index
    %c0_80 = arith.constant 0 : index
    %157 = vector.load %arg9[%c2_78, %c0_79, %c0_80] : memref<9x128x32xf32, #tpu.memory_space<vmem>>, vector<1x128x32xf32>
    %158 = vector.shape_cast %157 : vector<1x128x32xf32> to vector<128x32xf32>
    %cst_81 = arith.constant dense<0.000000e+00> : vector<8x32xf32>
    %159 = tpu.matmul %150, %158, %cst_81 {dimension_numbers = #tpu.dot_dimension_numbers<[1], [0], [0], [1], [0, 0, 1, 1], [], []>} : vector<8x128xf32>, vector<128x32xf32>, vector<8x32xf32> -> vector<8x32xf32>
    %c3_82 = arith.constant 3 : index
    %c0_83 = arith.constant 0 : index
    %c0_84 = arith.constant 0 : index
    %160 = vector.load %arg9[%c3_82, %c0_83, %c0_84] : memref<9x128x32xf32, #tpu.memory_space<vmem>>, vector<1x128x32xf32>
    %161 = vector.shape_cast %160 : vector<1x128x32xf32> to vector<128x32xf32>
    %cst_85 = arith.constant dense<0.000000e+00> : vector<8x32xf32>
    %162 = tpu.matmul %150, %161, %cst_85 {dimension_numbers = #tpu.dot_dimension_numbers<[1], [0], [0], [1], [0, 0, 1, 1], [], []>} : vector<8x128xf32>, vector<128x32xf32>, vector<8x32xf32> -> vector<8x32xf32>
    %c4_86 = arith.constant 4 : index
    %c0_87 = arith.constant 0 : index
    %c0_88 = arith.constant 0 : index
    %163 = vector.load %arg9[%c4_86, %c0_87, %c0_88] : memref<9x128x32xf32, #tpu.memory_space<vmem>>, vector<1x128x32xf32>
    %164 = vector.shape_cast %163 : vector<1x128x32xf32> to vector<128x32xf32>
    %cst_89 = arith.constant dense<0.000000e+00> : vector<8x32xf32>
    %165 = tpu.matmul %150, %164, %cst_89 {dimension_numbers = #tpu.dot_dimension_numbers<[1], [0], [0], [1], [0, 0, 1, 1], [], []>} : vector<8x128xf32>, vector<128x32xf32>, vector<8x32xf32> -> vector<8x32xf32>
    %c5_90 = arith.constant 5 : index
    %c0_91 = arith.constant 0 : index
    %c0_92 = arith.constant 0 : index
    %166 = vector.load %arg9[%c5_90, %c0_91, %c0_92] : memref<9x128x32xf32, #tpu.memory_space<vmem>>, vector<1x128x32xf32>
    %167 = vector.shape_cast %166 : vector<1x128x32xf32> to vector<128x32xf32>
    %cst_93 = arith.constant dense<0.000000e+00> : vector<8x32xf32>
    %168 = tpu.matmul %150, %167, %cst_93 {dimension_numbers = #tpu.dot_dimension_numbers<[1], [0], [0], [1], [0, 0, 1, 1], [], []>} : vector<8x128xf32>, vector<128x32xf32>, vector<8x32xf32> -> vector<8x32xf32>
    %c6 = arith.constant 6 : index
    %c0_94 = arith.constant 0 : index
    %c0_95 = arith.constant 0 : index
    %169 = vector.load %arg9[%c6, %c0_94, %c0_95] : memref<9x128x32xf32, #tpu.memory_space<vmem>>, vector<1x128x32xf32>
    %170 = vector.shape_cast %169 : vector<1x128x32xf32> to vector<128x32xf32>
    %cst_96 = arith.constant dense<0.000000e+00> : vector<8x32xf32>
    %171 = tpu.matmul %150, %170, %cst_96 {dimension_numbers = #tpu.dot_dimension_numbers<[1], [0], [0], [1], [0, 0, 1, 1], [], []>} : vector<8x128xf32>, vector<128x32xf32>, vector<8x32xf32> -> vector<8x32xf32>
    %c7 = arith.constant 7 : index
    %c0_97 = arith.constant 0 : index
    %c0_98 = arith.constant 0 : index
    %172 = vector.load %arg9[%c7, %c0_97, %c0_98] : memref<9x128x32xf32, #tpu.memory_space<vmem>>, vector<1x128x32xf32>
    %173 = vector.shape_cast %172 : vector<1x128x32xf32> to vector<128x32xf32>
    %cst_99 = arith.constant dense<0.000000e+00> : vector<8x32xf32>
    %174 = tpu.matmul %150, %173, %cst_99 {dimension_numbers = #tpu.dot_dimension_numbers<[1], [0], [0], [1], [0, 0, 1, 1], [], []>} : vector<8x128xf32>, vector<128x32xf32>, vector<8x32xf32> -> vector<8x32xf32>
    %c8_100 = arith.constant 8 : index
    %c0_101 = arith.constant 0 : index
    %c0_102 = arith.constant 0 : index
    %175 = vector.load %arg9[%c8_100, %c0_101, %c0_102] : memref<9x128x32xf32, #tpu.memory_space<vmem>>, vector<1x128x32xf32>
    %176 = vector.shape_cast %175 : vector<1x128x32xf32> to vector<128x32xf32>
    %cst_103 = arith.constant dense<0.000000e+00> : vector<8x32xf32>
    %177 = tpu.matmul %150, %176, %cst_103 {dimension_numbers = #tpu.dot_dimension_numbers<[1], [0], [0], [1], [0, 0, 1, 1], [], []>} : vector<8x128xf32>, vector<128x32xf32>, vector<8x32xf32> -> vector<8x32xf32>
    %178 = tpu.concatenate %153, %156, %159, %162, %165, %168, %171, %174, %177 in 0 : vector<8x32xf32>, vector<8x32xf32>, vector<8x32xf32>, vector<8x32xf32>, vector<8x32xf32>, vector<8x32xf32>, vector<8x32xf32>, vector<8x32xf32>, vector<8x32xf32> -> vector<72x32xf32>
    %c2_104 = arith.constant 2 : index
    %c0_105 = arith.constant 0 : index
    %c0_106 = arith.constant 0 : index
    %179 = vector.load %arg2[%c2_104, %c0_105, %c0_106] : memref<3x8x72xf32, #tpu.memory_space<vmem>>, vector<1x8x72xf32>
    %180 = vector.shape_cast %179 : vector<1x8x72xf32> to vector<8x72xf32>
    %cst_107 = arith.constant dense<0.000000e+00> : vector<8x32xf32>
    %181 = tpu.matmul %180, %178, %cst_107 {dimension_numbers = #tpu.dot_dimension_numbers<[1], [0], [0], [1], [0, 0, 1, 1], [], []>} : vector<8x72xf32>, vector<72x32xf32>, vector<8x32xf32> -> vector<8x32xf32>
    %c0_108 = arith.constant 0 : index
    %c6_109 = arith.constant 6 : index
    %182 = vector.load %arg4[%c0_108, %c6_109] : memref<8x10xf32, #tpu.memory_space<vmem>>, vector<8x1xf32>
    %c0_110 = arith.constant 0 : index
    %c7_111 = arith.constant 7 : index
    %183 = vector.load %arg4[%c0_110, %c7_111] : memref<8x10xf32, #tpu.memory_space<vmem>>, vector<8x1xf32>
    %cst_112 = arith.constant dense<0.000000e+00> : vector<8xf32>
    %184 = vector.multi_reduction <add>, %181, %cst_112 [1] : vector<8x32xf32> to vector<8xf32>
    %185 = vector.shape_cast %184 : vector<8xf32> to vector<8x1xf32>
    %cst_113 = arith.constant 3.200000e+01 : f32
    %186 = vector.broadcast %cst_113 : f32 to vector<8x1xf32>
    %187 = arith.divf %185, %186 : vector<8x1xf32>
    %188 = vector.broadcast %187 : vector<8x1xf32> to vector<8x32xf32>
    %189 = arith.subf %181, %188 : vector<8x32xf32>
    %190 = arith.mulf %189, %189 : vector<8x32xf32>
    %cst_114 = arith.constant dense<0.000000e+00> : vector<8xf32>
    %191 = vector.multi_reduction <add>, %190, %cst_114 [1] : vector<8x32xf32> to vector<8xf32>
    %192 = vector.shape_cast %191 : vector<8xf32> to vector<8x1xf32>
    %cst_115 = arith.constant 3.200000e+01 : f32
    %193 = vector.broadcast %cst_115 : f32 to vector<8x1xf32>
    %194 = arith.divf %192, %193 : vector<8x1xf32>
    %cst_116 = arith.constant 9.99999974E-6 : f32
    %195 = vector.broadcast %cst_116 : f32 to vector<8x1xf32>
    %196 = arith.addf %194, %195 : vector<8x1xf32>
    %197 = math.rsqrt %196 : vector<8x1xf32>
    %198 = arith.mulf %182, %197 : vector<8x1xf32>
    %199 = vector.broadcast %198 : vector<8x1xf32> to vector<8x32xf32>
    %200 = arith.mulf %189, %199 : vector<8x32xf32>
    %201 = vector.broadcast %183 : vector<8x1xf32> to vector<8x32xf32>
    %202 = arith.addf %200, %201 : vector<8x32xf32>
    %cst_117 = arith.constant 0.000000e+00 : f32
    %203 = vector.broadcast %cst_117 : f32 to vector<8x32xf32>
    %204 = arith.cmpf ogt, %202, %203 : vector<8x32xf32>
    %cst_118 = arith.constant 1.000000e-01 : f32
    %205 = vector.broadcast %cst_118 : f32 to vector<8x32xf32>
    %206 = arith.mulf %205, %202 : vector<8x32xf32>
    %207 = arith.select %204, %202, %206 : vector<8x32xi1>, vector<8x32xf32>
    %208 = arith.addf %207, %30 : vector<8x32xf32>
    %c0_119 = arith.constant 0 : index
    %c0_120 = arith.constant 0 : index
    %209 = vector.load %arg10[%c0_119, %c0_120] : memref<8x32xf32, #tpu.memory_space<vmem>>, vector<8x32xf32>
    tpu.vector_store %arg10[%c0_119, %c0_120], %208 {strides = array<i32>} : memref<8x32xf32, #tpu.memory_space<vmem>>, vector<8x32xf32>,
    return
  }
}

</mosaic_0001>

<llo_original>
// kernel: tpu_custom_call.1
$region0: #{tpu_custom_call.1}
  #allocation0 [shape = 'u32[]', space=smem, size = 0x4, offset = 0x4, fixed_abs, tag = 'smem constant byte address 0x4 - core index']
  #allocation1 [shape = 'u32[144,128]{1,0:T(1,128)}', space=vmem, size = 0x12000, scoped, tag = 'internal scratch']
  %s0 = inlined_call_operand.vmem [shape: f32[4,512], index: 0, kind: input, shape index: {}]
  %s1 = inlined_call_operand.vmem [shape: f32[8,36], index: 1, kind: input, shape index: {}]
  %s2 = inlined_call_operand.vmem [shape: f32[3,8,72], index: 2, kind: input, shape index: {}]
  %s3 = inlined_call_operand.vmem [shape: f32[8,4], index: 3, kind: input, shape index: {}]
  %s4 = inlined_call_operand.vmem [shape: f32[8,10], index: 4, kind: input, shape index: {}]
  %s5 = inlined_call_operand.vmem [shape: f32[36,512], index: 5, kind: input, shape index: {}]
  %s6 = inlined_call_operand.vmem [shape: f32[72,128], index: 6, kind: input, shape index: {}]
  %s7 = inlined_call_operand.vmem [shape: f32[512,128], index: 7, kind: input, shape index: {}]
  %s8 = inlined_call_operand.vmem [shape: f32[512,32], index: 8, kind: input, shape index: {}]
  %s9 = inlined_call_operand.vmem [shape: f32[9,128,32], index: 9, kind: input, shape index: {}]
  %s10 = inlined_call_operand.hbm [shape: f32[8,32], index: 10, kind: output, shape index: {}]
  %s11 = sld [smem:[#allocation0]]
  $region50: #{tpu_custom_call.1} parent=0
    _
  %s13 = ssub.s32 1, %s11
  %s14 = scalar_select 0, %s13, %s11
  $region1: #{tpu_custom_call.1} parent=0
    #allocation2 [shape = 'u8[4096]{0}', space=vmem, size = 0x1000, scoped, tag = 'output window, operand 0, single buffered']
    #allocation3 [shape = 's32[1]{0}', space=sflag, size = 0x4, scoped, tag = 'scoped memory for tpu_custom_call.1']
    %15 = vsyncpa [#allocation3], 0
    // Predicated region
    $region2: #{tpu_custom_call.1} parent=1 // pred_check
      _
    $region3: #{tpu_custom_call.1} parent=1 // pred_check_branch
      %17 = sbr.rel (0) target = $region5
    $region4: #{tpu_custom_call.1} parent=1 // pred_region
      _
    $region5: #{tpu_custom_call.1} parent=1 // pred_fallthru
      _
    // Predicated region
    $region6: #{tpu_custom_call.1} parent=1 // pred_check
      _
    $region7: #{tpu_custom_call.1} parent=1 // pred_check_branch
      %19 = sbr.rel (0) target = $region9
    $region8: #{tpu_custom_call.1} parent=1 // pred_region
      _
    $region9: #{tpu_custom_call.1} parent=1 // pred_fallthru
      _
    // Predicated region
    $region10: #{tpu_custom_call.1} parent=1 // pred_check
      _
    $region11: #{tpu_custom_call.1} parent=1 // pred_check_branch
      %21 = sbr.rel (0) target = $region13
    $region12: #{tpu_custom_call.1} parent=1 // pred_region
      _
    $region13: #{tpu_custom_call.1} parent=1 // pred_fallthru
      _
    // Predicated region
    $region14: #{tpu_custom_call.1} parent=1 // pred_check
      _
    $region15: #{tpu_custom_call.1} parent=1 // pred_check_branch
      %23 = sbr.rel (0) target = $region17
    $region16: #{tpu_custom_call.1} parent=1 // pred_region
      _
    $region17: #{tpu_custom_call.1} parent=1 // pred_fallthru
      _
    // Predicated region
    $region18: #{tpu_custom_call.1} parent=1 // pred_check
      _
    $region19: #{tpu_custom_call.1} parent=1 // pred_check_branch
      %25 = sbr.rel (0) target = $region21
    $region20: #{tpu_custom_call.1} parent=1 // pred_region
      _
    $region21: #{tpu_custom_call.1} parent=1 // pred_fallthru
      _
    // Predicated region
    $region22: #{tpu_custom_call.1} parent=1 // pred_check
      _
    $region23: #{tpu_custom_call.1} parent=1 // pred_check_branch
      %27 = sbr.rel (0) target = $region25
    $region24: #{tpu_custom_call.1} parent=1 // pred_region
      _
    $region25: #{tpu_custom_call.1} parent=1 // pred_fallthru
      _
    // Predicated region
    $region26: #{tpu_custom_call.1} parent=1 // pred_check
      _
    $region27: #{tpu_custom_call.1} parent=1 // pred_check_branch
      %29 = sbr.rel (0) target = $region29
    $region28: #{tpu_custom_call.1} parent=1 // pred_region
      _
    $region29: #{tpu_custom_call.1} parent=1 // pred_fallthru
      _
    // Predicated region
    $region30: #{tpu_custom_call.1} parent=1 // pred_check
      _
    $region31: #{tpu_custom_call.1} parent=1 // pred_check_branch
      %31 = sbr.rel (0) target = $region33
    $region32: #{tpu_custom_call.1} parent=1 // pred_region
      _
    $region33: #{tpu_custom_call.1} parent=1 // pred_fallthru
      _
    // Predicated region
    $region34: #{tpu_custom_call.1} parent=1 // pred_check
      _
    $region35: #{tpu_custom_call.1} parent=1 // pred_check_branch
      %33 = sbr.rel (0) target = $region37
    $region36: #{tpu_custom_call.1} parent=1 // pred_region
      _
    $region37: #{tpu_custom_call.1} parent=1 // pred_fallthru
      _
    // Predicated region
    $region38: #{tpu_custom_call.1} parent=1 // pred_check
      _
    $region39: #{tpu_custom_call.1} parent=1 // pred_check_branch
      %35 = sbr.rel (0) target = $region41
    $region40: #{tpu_custom_call.1} parent=1 // pred_region
      _
    $region41: #{tpu_custom_call.1} parent=1 // pred_fallthru
      _
    %v36 = vld [vmem:[%s0] sm:$0xff]
    %v37 = vld [vmem:[%s0 + $0x8] sm:$0xff]
    %v38 = vld [vmem:[%s3] sm:$0xff]
    %v41 = vcombine.high %v36, %v36
    %v42 = vcombine.high %v37, %v37
    %vm43 = vcmask 31744
    %v45 = vsel %vm43, %v38, 0
    %vm47 = vcmask 1043456
    %v48 = vsel %vm47, %v36, 0
    %v50 = vsel %vm47, %v41, 0
    %v52 = vsel %vm47, %v37, 0
    %v54 = vsel %vm47, %v42, 0
    %56 = vmatprep.subr.mxu0 0.0
    %57 = vmatpush1.msra.mxu0 0.0
    %58 = vmatprep.subr.mxu0 0.0
    %59 = vmatpush1.msra.mxu0 0.0
    %60 = vmatprep.subr.mxu0 0.0
    %61 = vmatpush1.msra.mxu0 0.0
    %62 = vmatprep.subr.mxu0 0.0
    %63 = vmatpush1.msra.mxu0 0.0
    %64 = vmatprep.subr.mxu0 0.0
    %65 = vmatpush1.msra.mxu0 0.0
    %66 = vmatprep.subr.mxu0 0.0
    %67 = vmatpush1.msra.mxu0 0.0
    %68 = vmatprep.subr.mxu0 0.0
    %69 = vmatpush1.msra.mxu0 0.0
    %70 = vmatprep.subr.mxu0 0.0
    %71 = vmatpush1.msra.mxu0 0.0
    %72 = vmatprep.subr.mxu0 0.0
    %73 = vmatpush1.msra.mxu0 0.0
    %74 = vmatprep.subr.mxu0 0.0
    %75 = vmatpush1.msra.mxu0 0.0
    %76 = vmatprep.subr.mxu0 0.0
    %77 = vmatpush1.msra.mxu0 0.0
    %78 = vmatprep.subr.mxu0 0.0
    %79 = vmatpush1.msra.mxu0 0.0
    %80 = vmatprep.subr.mxu0 0.0
    %81 = vmatpush1.msra.mxu0 0.0
    %82 = vmatprep.subr.mxu0 0.0
    %83 = vmatpush1.msra.mxu0 0.0
    %84 = vmatprep.subr.mxu0 0.0
    %85 = vmatpush1.msra.mxu0 0.0
    %86 = vmatprep.subr.mxu0 %v50
    %87 = vmatpush1.msra.mxu0 %v48
    %88 = vmatprep.subr.mxu0 0.0
    %89 = vmatpush2.msra.mxu0 0.0
    %90 = vmatprep.subr.mxu0 0.0
    %91 = vmatpush2.msra.mxu0 0.0
    %92 = vmatprep.subr.mxu0 0.0
    %93 = vmatpush2.msra.mxu0 0.0
    %94 = vmatprep.subr.mxu0 0.0
    %95 = vmatpush2.msra.mxu0 0.0
    %96 = vmatprep.subr.mxu0 0.0
    %97 = vmatpush2.msra.mxu0 0.0
    %98 = vmatprep.subr.mxu0 0.0
    %99 = vmatpush2.msra.mxu0 0.0
    %100 = vmatprep.subr.mxu0 0.0
    %101 = vmatpush2.msra.mxu0 0.0
    %102 = vmatprep.subr.mxu0 0.0
    %103 = vmatpush2.msra.mxu0 0.0
    %104 = vmatprep.subr.mxu0 0.0
    %105 = vmatpush2.msra.mxu0 0.0
    %106 = vmatprep.subr.mxu0 0.0
    %107 = vmatpush2.msra.mxu0 0.0
    %108 = vmatprep.subr.mxu0 0.0
    %109 = vmatpush2.msra.mxu0 0.0
    %110 = vmatprep.subr.mxu0 0.0
    %111 = vmatpush2.msra.mxu0 0.0
    %112 = vmatprep.subr.mxu0 0.0
    %113 = vmatpush2.msra.mxu0 0.0
    %114 = vmatprep.subr.mxu0 0.0
    %115 = vmatpush2.msra.mxu0 0.0
    %116 = vmatprep.subr.mxu0 0.0
    %117 = vmatpush2.msra.mxu0 0.0
    %118 = vmatprep.subr.mxu0 0.0
    %119 = vmatpush2.msra.mxu0 0.0
    %120 = vmatprep.mubr.f32.mxu0 0.0
    %121 = vmatmul.mubr.f32.gmra.mxu0 %v45
    %v122 = vpop.f32.mrf.mxu0
    %v123 = vadd.f32 0.0, %v122
    %v124 = vpop.f32.mrf.mxu0
    %v125 = vadd.f32 0.0, %v124
    %126 = vdwg.mxu0
    %127 = vmatprep.subr.mxu0 0.0
    %128 = vmatpush1.msra.mxu0 0.0
    %129 = vmatprep.subr.mxu0 0.0
    %130 = vmatpush1.msra.mxu0 0.0
    %131 = vmatprep.subr.mxu0 0.0
    %132 = vmatpush1.msra.mxu0 0.0
    %133 = vmatprep.subr.mxu0 0.0
    %134 = vmatpush1.msra.mxu0 0.0
    %135 = vmatprep.subr.mxu0 0.0
    %136 = vmatpush1.msra.mxu0 0.0
    %137 = vmatprep.subr.mxu0 0.0
    %138 = vmatpush1.msra.mxu0 0.0
    %139 = vmatprep.subr.mxu0 0.0
    %140 = vmatpush1.msra.mxu0 0.0
    %141 = vmatprep.subr.mxu0 0.0
    %142 = vmatpush1.msra.mxu0 0.0
    %143 = vmatprep.subr.mxu0 0.0
    %144 = vmatpush1.msra.mxu0 0.0
    %145 = vmatprep.subr.mxu0 0.0
    %146 = vmatpush1.msra.mxu0 0.0
    %147 = vmatprep.subr.mxu0 0.0
    %148 = vmatpush1.msra.mxu0 0.0
    %149 = vmatprep.subr.mxu0 0.0
    %150 = vmatpush1.msra.mxu0 0.0
    %151 = vmatprep.subr.mxu0 0.0
    %152 = vmatpush1.msra.mxu0 0.0
    %153 = vmatprep.subr.mxu0 0.0
    %154 = vmatpush1.msra.mxu0 0.0
    %155 = vmatprep.subr.mxu0 0.0
    %156 = vmatpush1.msra.mxu0 0.0
    %157 = vmatprep.subr.mxu0 %v54
    %158 = vmatpush1.msra.mxu0 %v52
    %159 = vmatprep.subr.mxu0 0.0
    %160 = vmatpush2.msra.mxu0 0.0
    %161 = vmatprep.subr.mxu0 0.0
    %162 = vmatpush2.msra.mxu0 0.0
    %163 = vmatprep.subr.mxu0 0.0
    %164 = vmatpush2.msra.mxu0 0.0
    %165 = vmatprep.subr.mxu0 0.0
    %166 = vmatpush2.msra.mxu0 0.0
    %167 = vmatprep.subr.mxu0 0.0
    %168 = vmatpush2.msra.mxu0 0.0
    %169 = vmatprep.subr.mxu0 0.0
    %170 = vmatpush2.msra.mxu0 0.0
    %171 = vmatprep.subr.mxu0 0.0
    %172 = vmatpush2.msra.mxu0 0.0
    %173 = vmatprep.subr.mxu0 0.0
    %174 = vmatpush2.msra.mxu0 0.0
    %175 = vmatprep.subr.mxu0 0.0
    %176 = vmatpush2.msra.mxu0 0.0
    %177 = vmatprep.subr.mxu0 0.0
    %178 = vmatpush2.msra.mxu0 0.0
    %179 = vmatprep.subr.mxu0 0.0
    %180 = vmatpush2.msra.mxu0 0.0
    %181 = vmatprep.subr.mxu0 0.0
    %182 = vmatpush2.msra.mxu0 0.0
    %183 = vmatprep.subr.mxu0 0.0
    %184 = vmatpush2.msra.mxu0 0.0
    %185 = vmatprep.subr.mxu0 0.0
    %186 = vmatpush2.msra.mxu0 0.0
    %187 = vmatprep.subr.mxu0 0.0
    %188 = vmatpush2.msra.mxu0 0.0
    %189 = vmatprep.subr.mxu0 0.0
    %190 = vmatpush2.msra.mxu0 0.0
    %191 = vmatprep.mubr.f32.mxu0 0.0
    %192 = vmatmul.mubr.f32.gmra.mxu0 %v45
    %v193 = vpop.f32.mrf.mxu0
    %v194 = vadd.f32 0.0, %v193
    %v195 = vpop.f32.mrf.mxu0
    %v196 = vadd.f32 0.0, %v195
    %197 = vdwg.mxu0
    %v198 = vld [vmem:[%s4] sm:$0xff]
    %v199 = vadd.f32 %v123, %v125
    %v200 = vadd.f32 %v199, %v194
    %v201 = vadd.f32 %v200, %v196
    %202 = vadd.xlane.f32.xlu0 %v201
    %v203 = vpop.xlane.xlu0 %202
    %v204 = vrcp.pop 512.0
    %v205 = vmul.f32 %v203, %v204
    %v206 = vsub.f32 %v123, %v205
    %v207 = vsub.f32 %v125, %v205
    %v208 = vsub.f32 %v194, %v205
    %v209 = vsub.f32 %v196, %v205
    %v210 = vmul.f32 %v206, %v206
    %v211 = vmul.f32 %v207, %v207
    %v212 = vmul.f32 %v208, %v208
    %v213 = vmul.f32 %v209, %v209
    %v214 = vadd.f32 %v210, %v211
    %v215 = vadd.f32 %v214, %v212
    %v216 = vadd.f32 %v215, %v213
    %217 = vadd.xlane.f32.xlu0 %v216
    %v218 = vpop.xlane.xlu0 %217
    %v219 = vmul.f32 %v218, %v204
    %v220 = vadd.f32 %v219, 1e-05
    %v221 = vrsqrt.pop %v220
    %v222 = vmul.f32 %v198, %v221
    %224 = vset.pattern.permute.xlu0 8
    %225 = vperm.xlu0 %224, %v222
    %v226 = vpop.permute.xlu0 %225
    %v228 = vmul.f32 %v206, %v226
    %v229 = vmul.f32 %v207, %v226
    %v230 = vmul.f32 %v208, %v226
    %v231 = vmul.f32 %v209, %v226
    %233 = vset.pattern.permute.xlu0 9
    %234 = vperm.xlu0 %233, %v198
    %v235 = vpop.permute.xlu0 %234
    %v237 = vadd.f32 %v228, %v235
    %v238 = vadd.f32 %v229, %v235
    %v239 = vadd.f32 %v230, %v235
    %v240 = vadd.f32 %v231, %v235
    %vm241 = vcmp.gt.f32.partialorder %v237, 0.0
    %vm242 = vcmp.gt.f32.partialorder %v238, 0.0
    %vm243 = vcmp.gt.f32.partialorder %v239, 0.0
    %vm244 = vcmp.gt.f32.partialorder %v240, 0.0
    %v245 = vmul.f32 %v237, 0.1
    %v246 = vmul.f32 %v238, 0.1
    %v247 = vmul.f32 %v239, 0.1
    %v248 = vmul.f32 %v240, 0.1
    %v249 = vsel %vm241, %v237, %v245
    %v250 = vsel %vm242, %v238, %v246
    %v251 = vsel %vm243, %v239, %v247
    %v252 = vsel %vm244, %v240, %v248
    %v253 = vld [vmem:[%s8] sm:$0xff]
    %v254 = vld [vmem:[%s8 + $0x8] sm:$0xff]
    %v255 = vld [vmem:[%s8 + $0x10] sm:$0xff]
    %v256 = vld [vmem:[%s8 + $0x18] sm:$0xff]
    %v257 = vld [vmem:[%s8 + $0x20] sm:$0xff]
    %v258 = vld [vmem:[%s8 + $0x28] sm:$0xff]
    %v259 = vld [vmem:[%s8 + $0x30] sm:$0xff]
    %v260 = vld [vmem:[%s8 + $0x38] sm:$0xff]
    %v261 = vld [vmem:[%s8 + $0x40] sm:$0xff]
    %v262 = vld [vmem:[%s8 + $0x48] sm:$0xff]
    %v263 = vld [vmem:[%s8 + $0x50] sm:$0xff]
    %v264 = vld [vmem:[%s8 + $0x58] sm:$0xff]
    %v265 = vld [vmem:[%s8 + $0x60] sm:$0xff]
    %v266 = vld [vmem:[%s8 + $0x68] sm:$0xff]
    %v267 = vld [vmem:[%s8 + $0x70] sm:$0xff]
    %v268 = vld [vmem:[%s8 + $0x78] sm:$0xff]
    %v269 = vld [vmem:[%s8 + $0x80] sm:$0xff]
    %v270 = vld [vmem:[%s8 + $0x88] sm:$0xff]
    %v271 = vld [vmem:[%s8 + $0x90] sm:$0xff]
    %v272 = vld [vmem:[%s8 + $0x98] sm:$0xff]
    %v273 = vld [vmem:[%s8 + $0xa0] sm:$0xff]
    %v274 = vld [vmem:[%s8 + $0xa8] sm:$0xff]
    %v275 = vld [vmem:[%s8 + $0xb0] sm:$0xff]
    %v276 = vld [vmem:[%s8 + $0xb8] sm:$0xff]
    %v277 = vld [vmem:[%s8 + $0xc0] sm:$0xff]
    %v278 = vld [vmem:[%s8 + $0xc8] sm:$0xff]
    %v279 = vld [vmem:[%s8 + $0xd0] sm:$0xff]
    %v280 = vld [vmem:[%s8 + $0xd8] sm:$0xff]
    %v281 = vld [vmem:[%s8 + $0xe0] sm:$0xff]
    %v282 = vld [vmem:[%s8 + $0xe8] sm:$0xff]
    %v283 = vld [vmem:[%s8 + $0xf0] sm:$0xff]
    %v284 = vld [vmem:[%s8 + $0xf8] sm:$0xff]
    %v285 = vld [vmem:[%s8 + $0x100] sm:$0xff]
    %v286 = vld [vmem:[%s8 + $0x108] sm:$0xff]
    %v287 = vld [vmem:[%s8 + $0x110] sm:$0xff]
    %v288 = vld [vmem:[%s8 + $0x118] sm:$0xff]
    %v289 = vld [vmem:[%s8 + $0x120] sm:$0xff]
    %v290 = vld [vmem:[%s8 + $0x128] sm:$0xff]
    %v291 = vld [vmem:[%s8 + $0x130] sm:$0xff]
    %v292 = vld [vmem:[%s8 + $0x138] sm:$0xff]
    %v293 = vld [vmem:[%s8 + $0x140] sm:$0xff]
    %v294 = vld [vmem:[%s8 + $0x148] sm:$0xff]
    %v295 = vld [vmem:[%s8 + $0x150] sm:$0xff]
    %v296 = vld [vmem:[%s8 + $0x158] sm:$0xff]
    %v297 = vld [vmem:[%s8 + $0x160] sm:$0xff]
    %v298 = vld [vmem:[%s8 + $0x168] sm:$0xff]
    %v299 = vld [vmem:[%s8 + $0x170] sm:$0xff]
    %v300 = vld [vmem:[%s8 + $0x178] sm:$0xff]
    %v301 = vld [vmem:[%s8 + $0x180] sm:$0xff]
    %v302 = vld [vmem:[%s8 + $0x188] sm:$0xff]
    %v303 = vld [vmem:[%s8 + $0x190] sm:$0xff]
    %v304 = vld [vmem:[%s8 + $0x198] sm:$0xff]
    %v305 = vld [vmem:[%s8 + $0x1a0] sm:$0xff]
    %v306 = vld [vmem:[%s8 + $0x1a8] sm:$0xff]
    %v307 = vld [vmem:[%s8 + $0x1b0] sm:$0xff]
    %v308 = vld [vmem:[%s8 + $0x1b8] sm:$0xff]
    %v309 = vld [vmem:[%s8 + $0x1c0] sm:$0xff]
    %v310 = vld [vmem:[%s8 + $0x1c8] sm:$0xff]
    %v311 = vld [vmem:[%s8 + $0x1d0] sm:$0xff]
    %v312 = vld [vmem:[%s8 + $0x1d8] sm:$0xff]
    %v313 = vld [vmem:[%s8 + $0x1e0] sm:$0xff]
    %v314 = vld [vmem:[%s8 + $0x1e8] sm:$0xff]
    %v315 = vld [vmem:[%s8 + $0x1f0] sm:$0xff]
    %v316 = vld [vmem:[%s8 + $0x1f8] sm:$0xff]
    %317 = vmatprep.subr.mxu0 0.0
    %318 = vmatpush1.msra.mxu0 %v268
    %319 = vmatprep.subr.mxu0 0.0
    %320 = vmatpush1.msra.mxu0 %v267
    %321 = vmatprep.subr.mxu0 0.0
    %322 = vmatpush1.msra.mxu0 %v266
    %323 = vmatprep.subr.mxu0 0.0
    %324 = vmatpush1.msra.mxu0 %v265
    %325 = vmatprep.subr.mxu0 0.0
    %326 = vmatpush1.msra.mxu0 %v264
    %327 = vmatprep.subr.mxu0 0.0
    %328 = vmatpush1.msra.mxu0 %v263
    %329 = vmatprep.subr.mxu0 0.0
    %330 = vmatpush1.msra.mxu0 %v262
    %331 = vmatprep.subr.mxu0 0.0
    %332 = vmatpush1.msra.mxu0 %v261
    %333 = vmatprep.subr.mxu0 0.0
    %334 = vmatpush1.msra.mxu0 %v260
    %335 = vmatprep.subr.mxu0 0.0
    %336 = vmatpush1.msra.mxu0 %v259
    %337 = vmatprep.subr.mxu0 0.0
    %338 = vmatpush1.msra.mxu0 %v258
    %339 = vmatprep.subr.mxu0 0.0
    %340 = vmatpush1.msra.mxu0 %v257
    %341 = vmatprep.subr.mxu0 0.0
    %342 = vmatpush1.msra.mxu0 %v256
    %343 = vmatprep.subr.mxu0 0.0
    %344 = vmatpush1.msra.mxu0 %v255
    %345 = vmatprep.subr.mxu0 0.0
    %346 = vmatpush1.msra.mxu0 %v254
    %347 = vmatprep.subr.mxu0 0.0
    %348 = vmatpush1.msra.mxu0 %v253
    %349 = vmatprep.subr.mxu0 0.0
    %350 = vmatpush2.msra.mxu0 %v284
    %351 = vmatprep.subr.mxu0 0.0
    %352 = vmatpush2.msra.mxu0 %v283
    %353 = vmatprep.subr.mxu0 0.0
    %354 = vmatpush2.msra.mxu0 %v282
    %355 = vmatprep.subr.mxu0 0.0
    %356 = vmatpush2.msra.mxu0 %v281
    %357 = vmatprep.subr.mxu0 0.0
    %358 = vmatpush2.msra.mxu0 %v280
    %359 = vmatprep.subr.mxu0 0.0
    %360 = vmatpush2.msra.mxu0 %v279
    %361 = vmatprep.subr.mxu0 0.0
    %362 = vmatpush2.msra.mxu0 %v278
    %363 = vmatprep.subr.mxu0 0.0
    %364 = vmatpush2.msra.mxu0 %v277
    %365 = vmatprep.subr.mxu0 0.0
    %366 = vmatpush2.msra.mxu0 %v276
    %367 = vmatprep.subr.mxu0 0.0
    %368 = vmatpush2.msra.mxu0 %v275
    %369 = vmatprep.subr.mxu0 0.0
    %370 = vmatpush2.msra.mxu0 %v274
    %371 = vmatprep.subr.mxu0 0.0
    %372 = vmatpush2.msra.mxu0 %v273
    %373 = vmatprep.subr.mxu0 0.0
    %374 = vmatpush2.msra.mxu0 %v272
    %375 = vmatprep.subr.mxu0 0.0
    %376 = vmatpush2.msra.mxu0 %v271
    %377 = vmatprep.subr.mxu0 0.0
    %378 = vmatpush2.msra.mxu0 %v270
    %379 = vmatprep.subr.mxu0 0.0
    %380 = vmatpush2.msra.mxu0 %v269
    %381 = vmatprep.mubr.f32.mxu0 %v250
    %382 = vmatmul.mubr.f32.gmra.mxu0 %v249
    %v383 = vpop.f32.mrf.mxu0
    %v384 = vadd.f32 0.0, %v383
    %v385 = vpop.f32.mrf.mxu0
    %386 = vdwg.mxu0
    %387 = vmatprep.subr.mxu0 0.0
    %388 = vmatpush1.msra.mxu0 %v300
    %389 = vmatprep.subr.mxu0 0.0
    %390 = vmatpush1.msra.mxu0 %v299
    %391 = vmatprep.subr.mxu0 0.0
    %392 = vmatpush1.msra.mxu0 %v298
    %393 = vmatprep.subr.mxu0 0.0
    %394 = vmatpush1.msra.mxu0 %v297
    %395 = vmatprep.subr.mxu0 0.0
    %396 = vmatpush1.msra.mxu0 %v296
    %397 = vmatprep.subr.mxu0 0.0
    %398 = vmatpush1.msra.mxu0 %v295
    %399 = vmatprep.subr.mxu0 0.0
    %400 = vmatpush1.msra.mxu0 %v294
    %401 = vmatprep.subr.mxu0 0.0
    %402 = vmatpush1.msra.mxu0 %v293
    %403 = vmatprep.subr.mxu0 0.0
    %404 = vmatpush1.msra.mxu0 %v292
    %405 = vmatprep.subr.mxu0 0.0
    %406 = vmatpush1.msra.mxu0 %v291
    %407 = vmatprep.subr.mxu0 0.0
    %408 = vmatpush1.msra.mxu0 %v290
    %409 = vmatprep.subr.mxu0 0.0
    %410 = vmatpush1.msra.mxu0 %v289
    %411 = vmatprep.subr.mxu0 0.0
    %412 = vmatpush1.msra.mxu0 %v288
    %413 = vmatprep.subr.mxu0 0.0
    %414 = vmatpush1.msra.mxu0 %v287
    %415 = vmatprep.subr.mxu0 0.0
    %416 = vmatpush1.msra.mxu0 %v286
    %417 = vmatprep.subr.mxu0 0.0
    %418 = vmatpush1.msra.mxu0 %v285
    %419 = vmatprep.subr.mxu0 0.0
    %420 = vmatpush2.msra.mxu0 %v316
    %421 = vmatprep.subr.mxu0 0.0
    %422 = vmatpush2.msra.mxu0 %v315
    %423 = vmatprep.subr.mxu0 0.0
    %424 = vmatpush2.msra.mxu0 %v314
    %425 = vmatprep.subr.mxu0 0.0
    %426 = vmatpush2.msra.mxu0 %v313
    %427 = vmatprep.subr.mxu0 0.0
    %428 = vmatpush2.msra.mxu0 %v312
    %429 = vmatprep.subr.mxu0 0.0
    %430 = vmatpush2.msra.mxu0 %v311
    %431 = vmatprep.subr.mxu0 0.0
    %432 = vmatpush2.msra.mxu0 %v310
    %433 = vmatprep.subr.mxu0 0.0
    %434 = vmatpush2.msra.mxu0 %v309
    %435 = vmatprep.subr.mxu0 0.0
    %436 = vmatpush2.msra.mxu0 %v308
    %437 = vmatprep.subr.mxu0 0.0
    %438 = vmatpush2.msra.mxu0 %v307
    %439 = vmatprep.subr.mxu0 0.0
    %440 = vmatpush2.msra.mxu0 %v306
    %441 = vmatprep.subr.mxu0 0.0
    %442 = vmatpush2.msra.mxu0 %v305
    %443 = vmatprep.subr.mxu0 0.0
    %444 = vmatpush2.msra.mxu0 %v304
    %445 = vmatprep.subr.mxu0 0.0
    %446 = vmatpush2.msra.mxu0 %v303
    %447 = vmatprep.subr.mxu0 0.0
    %448 = vmatpush2.msra.mxu0 %v302
    %449 = vmatprep.subr.mxu0 0.0
    %450 = vmatpush2.msra.mxu0 %v301
    %451 = vmatprep.mubr.f32.mxu0 %v252
    %452 = vmatmul.mubr.f32.gmra.mxu0 %v251
    %v453 = vpop.f32.mrf.mxu0
    %v454 = vadd.f32 %v384, %v453
    %v455 = vpop.f32.mrf.mxu0
    %456 = vdwg.mxu0
    %v457 = vld [vmem:[%s1] sm:$0xff]
    %v458 = vld [vmem:[%s5] sm:$0xff]
    %v459 = vld [vmem:[%s5 + $0x8] sm:$0xff]
    %v460 = vld [vmem:[%s5 + $0x10] sm:$0xff]
    %v461 = vld [vmem:[%s5 + $0x18] sm:$0xff]
    %v462 = vld [vmem:[%s5 + $0x20] sm:$0xff]
    %v463 = vld [vmem:[%s5 + $0x28] sm:$0xff]
    %v464 = vld [vmem:[%s5 + $0x30] sm:$0xff]
    %v465 = vld [vmem:[%s5 + $0x38] sm:$0xff]
    %v466 = vld [vmem:[%s5 + $0x40] sm:$0xff]
    %v467 = vld [vmem:[%s5 + $0x48] sm:$0xff]
    %v468 = vld [vmem:[%s5 + $0x50] sm:$0xff]
    %v469 = vld [vmem:[%s5 + $0x58] sm:$0xff]
    %v470 = vld [vmem:[%s5 + $0x60] sm:$0xff]
    %v471 = vld [vmem:[%s5 + $0x68] sm:$0xff]
    %v472 = vld [vmem:[%s5 + $0x70] sm:$0xff]
    %v473 = vld [vmem:[%s5 + $0x78] sm:$0xff]
    %v474 = vld [vmem:[%s5 + $0x80] sm:$0xf]
    %v475 = vld [vmem:[%s5 + $0x88] sm:$0xf]
    %v476 = vld [vmem:[%s5 + $0x90] sm:$0xf]
    %v477 = vld [vmem:[%s5 + $0x98] sm:$0xf]
    %480 = vrot.lane.b32.xlu0 %v36, 17
    %v481 = vpop.permute.xlu0 %480
    %482 = vrot.lane.b32.xlu0 %v41, 17
    %v483 = vpop.permute.xlu0 %482
    %484 = vrot.lane.b32.xlu0 %v37, 17
    %v485 = vpop.permute.xlu0 %484
    %486 = vrot.lane.b32.xlu0 %v42, 17
    %v487 = vpop.permute.xlu0 %486
    %v488 = vlaneseq
    %v489 = vand.u32 %v488, 127
    %vm490 = vcmp.lt.s32.totalorder %v489, 17
    %v491 = vsel %vm490, %v485, %v487
    %v492 = vsel %vm490, %v483, %v485
    %v493 = vsel %vm490, %v481, %v483
    %v494 = vsel %vm490, %v487, %v481
    %495 = vrot.lane.b32.xlu0 %v36, 16
    %v496 = vpop.permute.xlu0 %495
    %497 = vrot.lane.b32.xlu0 %v41, 16
    %v498 = vpop.permute.xlu0 %497
    %499 = vrot.lane.b32.xlu0 %v37, 16
    %v500 = vpop.permute.xlu0 %499
    %501 = vrot.lane.b32.xlu0 %v42, 16
    %v502 = vpop.permute.xlu0 %501
    %vm503 = vcmp.lt.s32.totalorder %v489, 16
    %v504 = vsel %vm503, %v500, %v502
    %v505 = vsel %vm503, %v498, %v500
    %v506 = vsel %vm503, %v496, %v498
    %v507 = vsel %vm503, %v502, %v496
    %508 = vrot.lane.b32.xlu0 %v36, 15
    %v509 = vpop.permute.xlu0 %508
    %510 = vrot.lane.b32.xlu0 %v41, 15
    %v511 = vpop.permute.xlu0 %510
    %512 = vrot.lane.b32.xlu0 %v37, 15
    %v513 = vpop.permute.xlu0 %512
    %514 = vrot.lane.b32.xlu0 %v42, 15
    %v515 = vpop.permute.xlu0 %514
    %vm516 = vcmp.lt.s32.totalorder %v489, 15
    %v517 = vsel %vm516, %v513, %v515
    %v518 = vsel %vm516, %v511, %v513
    %v519 = vsel %vm516, %v509, %v511
    %v520 = vsel %vm516, %v515, %v509
    %521 = vrot.lane.b32.xlu0 %v36, 1
    %v522 = vpop.permute.xlu0 %521
    %523 = vrot.lane.b32.xlu0 %v41, 1
    %v524 = vpop.permute.xlu0 %523
    %525 = vrot.lane.b32.xlu0 %v37, 1
    %v526 = vpop.permute.xlu0 %525
    %527 = vrot.lane.b32.xlu0 %v42, 1
    %v528 = vpop.permute.xlu0 %527
    %vm529 = vcmp.lt.s32.totalorder %v489, 1
    %v530 = vsel %vm529, %v526, %v528
    %v531 = vsel %vm529, %v524, %v526
    %v532 = vsel %vm529, %v522, %v524
    %v533 = vsel %vm529, %v528, %v522
    %534 = vrot.lane.b32.xlu0 %v36, 127
    %v535 = vpop.permute.xlu0 %534
    %536 = vrot.lane.b32.xlu0 %v41, 127
    %v537 = vpop.permute.xlu0 %536
    %538 = vrot.lane.b32.xlu0 %v37, 127
    %v539 = vpop.permute.xlu0 %538
    %540 = vrot.lane.b32.xlu0 %v42, 127
    %v541 = vpop.permute.xlu0 %540
    %vm542 = vcmp.lt.s32.totalorder %v489, 127
    %v543 = vsel %vm542, %v539, %v541
    %v544 = vsel %vm542, %v537, %v539
    %v545 = vsel %vm542, %v535, %v537
    %v546 = vsel %vm542, %v541, %v535
    %547 = vrot.lane.b32.xlu0 %v36, 113
    %v548 = vpop.permute.xlu0 %547
    %549 = vrot.lane.b32.xlu0 %v41, 113
    %v550 = vpop.permute.xlu0 %549
    %551 = vrot.lane.b32.xlu0 %v37, 113
    %v552 = vpop.permute.xlu0 %551
    %553 = vrot.lane.b32.xlu0 %v42, 113
    %v554 = vpop.permute.xlu0 %553
    %vm555 = vcmp.lt.s32.totalorder %v489, 113
    %v556 = vsel %vm555, %v552, %v554
    %v557 = vsel %vm555, %v550, %v552
    %v558 = vsel %vm555, %v548, %v550
    %v559 = vsel %vm555, %v554, %v548
    %560 = vrot.lane.b32.xlu0 %v36, 112
    %v561 = vpop.permute.xlu0 %560
    %562 = vrot.lane.b32.xlu0 %v41, 112
    %v563 = vpop.permute.xlu0 %562
    %564 = vrot.lane.b32.xlu0 %v37, 112
    %v565 = vpop.permute.xlu0 %564
    %566 = vrot.lane.b32.xlu0 %v42, 112
    %v567 = vpop.permute.xlu0 %566
    %vm568 = vcmp.lt.s32.totalorder %v489, 112
    %v569 = vsel %vm568, %v565, %v567
    %v570 = vsel %vm568, %v563, %v565
    %v571 = vsel %vm568, %v561, %v563
    %v572 = vsel %vm568, %v567, %v561
    %573 = vrot.lane.b32.xlu0 %v36, 111
    %v574 = vpop.permute.xlu0 %573
    %575 = vrot.lane.b32.xlu0 %v41, 111
    %v576 = vpop.permute.xlu0 %575
    %577 = vrot.lane.b32.xlu0 %v37, 111
    %v578 = vpop.permute.xlu0 %577
    %579 = vrot.lane.b32.xlu0 %v42, 111
    %v580 = vpop.permute.xlu0 %579
    %vm581 = vcmp.lt.s32.totalorder %v489, 111
    %v582 = vsel %vm581, %v578, %v580
    %v583 = vsel %vm581, %v576, %v578
    %v584 = vsel %vm581, %v574, %v576
    %v585 = vsel %vm581, %v580, %v574
    %v590 = vrot.slane %v507, 4
    %v591 = vrot.slane %v506, 4
    %v592 = vrot.slane %v505, 4
    %v593 = vrot.slane %v504, 4
    %v602 = vrot.slane %v533, 4
    %v603 = vrot.slane %v532, 4
    %v604 = vrot.slane %v531, 4
    %v605 = vrot.slane %v530, 4
    %v614 = vrot.slane %v545, 4
    %v615 = vrot.slane %v544, 4
    %v616 = vrot.slane %v543, 4
    %v617 = vrot.slane %v546, 4
    %v626 = vrot.slane %v571, 4
    %v627 = vrot.slane %v570, 4
    %v628 = vrot.slane %v569, 4
    %v629 = vrot.slane %v572, 4
    %v634 = vsel %vm47, %v494, %v590
    %v635 = vsel %vm47, %v493, %v591
    %v636 = vsel %vm47, %v492, %v592
    %v637 = vsel %vm47, %v491, %v593
    %v638 = vsel %vm47, %v520, %v602
    %v639 = vsel %vm47, %v519, %v603
    %v640 = vsel %vm47, %v518, %v604
    %v641 = vsel %vm47, %v517, %v605
    %v642 = vsel %vm47, %v36, %v614
    %v643 = vsel %vm47, %v41, %v615
    %v644 = vsel %vm47, %v37, %v616
    %v645 = vsel %vm47, %v42, %v617
    %v646 = vsel %vm47, %v558, %v626
    %v647 = vsel %vm47, %v557, %v627
    %v648 = vsel %vm47, %v556, %v628
    %v649 = vsel %vm47, %v559, %v629
    %v650 = vmul.f32 %v634, %v458
    %v651 = vmul.f32 %v635, %v459
    %v652 = vmul.f32 %v636, %v460
    %v653 = vmul.f32 %v637, %v461
    %v654 = vmul.f32 %v638, %v462
    %v655 = vmul.f32 %v639, %v463
    %v656 = vmul.f32 %v640, %v464
    %v657 = vmul.f32 %v641, %v465
    %v658 = vmul.f32 %v642, %v466
    %v659 = vmul.f32 %v643, %v467
    %v660 = vmul.f32 %v644, %v468
    %v661 = vmul.f32 %v645, %v469
    %v662 = vmul.f32 %v646, %v470
    %v663 = vmul.f32 %v647, %v471
    %v664 = vmul.f32 %v648, %v472
    %v665 = vmul.f32 %v649, %v473
    %v666 = vmul.f32 %v584, %v474
    %v667 = vmul.f32 %v583, %v475
    %v668 = vmul.f32 %v582, %v476
    %v669 = vmul.f32 %v585, %v477
    %vm670 = vcmask 293888
    %v672 = vsel %vm670, %v457, 0
    %v675 = vsel %vm47, %v666, 0
    %v678 = vsel %vm47, %v667, 0
    %v681 = vsel %vm47, %v668, 0
    %v684 = vsel %vm47, %v669, 0
    %686 = vmatprep.subr.mxu0 0.0
    %687 = vmatpush1.msra.mxu0 0.0
    %688 = vmatprep.subr.mxu0 0.0
    %689 = vmatpush1.msra.mxu0 0.0
    %690 = vmatprep.subr.mxu0 0.0
    %691 = vmatpush1.msra.mxu0 0.0
    %692 = vmatprep.subr.mxu0 0.0
    %693 = vmatpush1.msra.mxu0 0.0
    %694 = vmatprep.subr.mxu0 0.0
    %695 = vmatpush1.msra.mxu0 0.0
    %696 = vmatprep.subr.mxu0 0.0
    %697 = vmatpush1.msra.mxu0 0.0
    %698 = vmatprep.subr.mxu0 0.0
    %699 = vmatpush1.msra.mxu0 0.0
    %700 = vmatprep.subr.mxu0 0.0
    %701 = vmatpush1.msra.mxu0 0.0
    %702 = vmatprep.subr.mxu0 0.0
    %703 = vmatpush1.msra.mxu0 0.0
    %704 = vmatprep.subr.mxu0 0.0
    %705 = vmatpush1.msra.mxu0 0.0
    %706 = vmatprep.subr.mxu0 0.0
    %707 = vmatpush1.msra.mxu0 0.0
    %708 = vmatprep.subr.mxu0 %v678
    %709 = vmatpush1.msra.mxu0 %v675
    %710 = vmatprep.subr.mxu0 %v663
    %711 = vmatpush1.msra.mxu0 %v662
    %712 = vmatprep.subr.mxu0 %v659
    %713 = vmatpush1.msra.mxu0 %v658
    %714 = vmatprep.subr.mxu0 %v655
    %715 = vmatpush1.msra.mxu0 %v654
    %716 = vmatprep.subr.mxu0 %v651
    %717 = vmatpush1.msra.mxu0 %v650
    %718 = vmatprep.subr.mxu0 0.0
    %719 = vmatpush2.msra.mxu0 0.0
    %720 = vmatprep.subr.mxu0 0.0
    %721 = vmatpush2.msra.mxu0 0.0
    %722 = vmatprep.subr.mxu0 0.0
    %723 = vmatpush2.msra.mxu0 0.0
    %724 = vmatprep.subr.mxu0 0.0
    %725 = vmatpush2.msra.mxu0 0.0
    %726 = vmatprep.subr.mxu0 0.0
    %727 = vmatpush2.msra.mxu0 0.0
    %728 = vmatprep.subr.mxu0 0.0
    %729 = vmatpush2.msra.mxu0 0.0
    %730 = vmatprep.subr.mxu0 0.0
    %731 = vmatpush2.msra.mxu0 0.0
    %732 = vmatprep.subr.mxu0 0.0
    %733 = vmatpush2.msra.mxu0 0.0
    %734 = vmatprep.subr.mxu0 0.0
    %735 = vmatpush2.msra.mxu0 0.0
    %736 = vmatprep.subr.mxu0 0.0
    %737 = vmatpush2.msra.mxu0 0.0
    %738 = vmatprep.subr.mxu0 0.0
    %739 = vmatpush2.msra.mxu0 0.0
    %740 = vmatprep.subr.mxu0 0.0
    %741 = vmatpush2.msra.mxu0 0.0
    %742 = vmatprep.subr.mxu0 0.0
    %743 = vmatpush2.msra.mxu0 0.0
    %744 = vmatprep.subr.mxu0 0.0
    %745 = vmatpush2.msra.mxu0 0.0
    %746 = vmatprep.subr.mxu0 0.0
    %747 = vmatpush2.msra.mxu0 0.0
    %748 = vmatprep.subr.mxu0 0.0
    %749 = vmatpush2.msra.mxu0 0.0
    %750 = vmatprep.mubr.f32.mxu0 0.0
    %751 = vmatmul.mubr.f32.gmra.mxu0 %v672
    %v752 = vpop.f32.mrf.mxu0
    %v753 = vadd.f32 0.0, %v752
    %v754 = vpop.f32.mrf.mxu0
    %v755 = vadd.f32 0.0, %v754
    %756 = vdwg.mxu0
    %757 = vmatprep.subr.mxu0 0.0
    %758 = vmatpush1.msra.mxu0 0.0
    %759 = vmatprep.subr.mxu0 0.0
    %760 = vmatpush1.msra.mxu0 0.0
    %761 = vmatprep.subr.mxu0 0.0
    %762 = vmatpush1.msra.mxu0 0.0
    %763 = vmatprep.subr.mxu0 0.0
    %764 = vmatpush1.msra.mxu0 0.0
    %765 = vmatprep.subr.mxu0 0.0
    %766 = vmatpush1.msra.mxu0 0.0
    %767 = vmatprep.subr.mxu0 0.0
    %768 = vmatpush1.msra.mxu0 0.0
    %769 = vmatprep.subr.mxu0 0.0
    %770 = vmatpush1.msra.mxu0 0.0
    %771 = vmatprep.subr.mxu0 0.0
    %772 = vmatpush1.msra.mxu0 0.0
    %773 = vmatprep.subr.mxu0 0.0
    %774 = vmatpush1.msra.mxu0 0.0
    %775 = vmatprep.subr.mxu0 0.0
    %776 = vmatpush1.msra.mxu0 0.0
    %777 = vmatprep.subr.mxu0 0.0
    %778 = vmatpush1.msra.mxu0 0.0
    %779 = vmatprep.subr.mxu0 %v684
    %780 = vmatpush1.msra.mxu0 %v681
    %781 = vmatprep.subr.mxu0 %v665
    %782 = vmatpush1.msra.mxu0 %v664
    %783 = vmatprep.subr.mxu0 %v661
    %784 = vmatpush1.msra.mxu0 %v660
    %785 = vmatprep.subr.mxu0 %v657
    %786 = vmatpush1.msra.mxu0 %v656
    %787 = vmatprep.subr.mxu0 %v653
    %788 = vmatpush1.msra.mxu0 %v652
    %789 = vmatprep.subr.mxu0 0.0
    %790 = vmatpush2.msra.mxu0 0.0
    %791 = vmatprep.subr.mxu0 0.0
    %792 = vmatpush2.msra.mxu0 0.0
    %793 = vmatprep.subr.mxu0 0.0
    %794 = vmatpush2.msra.mxu0 0.0
    %795 = vmatprep.subr.mxu0 0.0
    %796 = vmatpush2.msra.mxu0 0.0
    %797 = vmatprep.subr.mxu0 0.0
    %798 = vmatpush2.msra.mxu0 0.0
    %799 = vmatprep.subr.mxu0 0.0
    %800 = vmatpush2.msra.mxu0 0.0
    %801 = vmatprep.subr.mxu0 0.0
    %802 = vmatpush2.msra.mxu0 0.0
    %803 = vmatprep.subr.mxu0 0.0
    %804 = vmatpush2.msra.mxu0 0.0
    %805 = vmatprep.subr.mxu0 0.0
    %806 = vmatpush2.msra.mxu0 0.0
    %807 = vmatprep.subr.mxu0 0.0
    %808 = vmatpush2.msra.mxu0 0.0
    %809 = vmatprep.subr.mxu0 0.0
    %810 = vmatpush2.msra.mxu0 0.0
    %811 = vmatprep.subr.mxu0 0.0
    %812 = vmatpush2.msra.mxu0 0.0
    %813 = vmatprep.subr.mxu0 0.0
    %814 = vmatpush2.msra.mxu0 0.0
    %815 = vmatprep.subr.mxu0 0.0
    %816 = vmatpush2.msra.mxu0 0.0
    %817 = vmatprep.subr.mxu0 0.0
    %818 = vmatpush2.msra.mxu0 0.0
    %819 = vmatprep.subr.mxu0 0.0
    %820 = vmatpush2.msra.mxu0 0.0
    %821 = vmatprep.mubr.f32.mxu0 0.0
    %822 = vmatmul.mubr.f32.gmra.mxu0 %v672
    %v823 = vpop.f32.mrf.mxu0
    %v824 = vadd.f32 0.0, %v823
    %v825 = vpop.f32.mrf.mxu0
    %v826 = vadd.f32 0.0, %v825
    %827 = vdwg.mxu0
    %v828 = vld [vmem:[%s4] sm:$0xff]
    %v829 = vadd.f32 %v753, %v755
    %v830 = vadd.f32 %v829, %v824
    %v831 = vadd.f32 %v830, %v826
    %832 = vadd.xlane.f32.xlu0 %v831
    %v833 = vpop.xlane.xlu0 %832
    %v834 = vmul.f32 %v833, %v204
    %v835 = vsub.f32 %v753, %v834
    %v836 = vsub.f32 %v755, %v834
    %v837 = vsub.f32 %v824, %v834
    %v838 = vsub.f32 %v826, %v834
    %v839 = vmul.f32 %v835, %v835
    %v840 = vmul.f32 %v836, %v836
    %v841 = vmul.f32 %v837, %v837
    %v842 = vmul.f32 %v838, %v838
    %v843 = vadd.f32 %v839, %v840
    %v844 = vadd.f32 %v843, %v841
    %v845 = vadd.f32 %v844, %v842
    %846 = vadd.xlane.f32.xlu0 %v845
    %v847 = vpop.xlane.xlu0 %846
    %v848 = vmul.f32 %v847, %v204
    %v849 = vadd.f32 %v848, 1e-05
    %v850 = vrsqrt.pop %v849
    %v851 = vmul.f32 %v828, %v850
    %853 = vset.pattern.permute.xlu0 0
    %854 = vperm.xlu0 %853, %v851
    %v855 = vpop.permute.xlu0 %854
    %v857 = vmul.f32 %v835, %v855
    %v858 = vmul.f32 %v836, %v855
    %v859 = vmul.f32 %v837, %v855
    %v860 = vmul.f32 %v838, %v855
    %862 = vset.pattern.permute.xlu0 1
    %863 = vperm.xlu0 %862, %v828
    %v864 = vpop.permute.xlu0 %863
    %v866 = vadd.f32 %v857, %v864
    %v867 = vadd.f32 %v858, %v864
    %v868 = vadd.f32 %v859, %v864
    %v869 = vadd.f32 %v860, %v864
    %vm870 = vcmp.gt.f32.partialorder %v866, 0.0
    %vm871 = vcmp.gt.f32.partialorder %v867, 0.0
    %vm872 = vcmp.gt.f32.partialorder %v868, 0.0
    %vm873 = vcmp.gt.f32.partialorder %v869, 0.0
    %v874 = vmul.f32 %v866, 0.1
    %v875 = vmul.f32 %v867, 0.1
    %v876 = vmul.f32 %v868, 0.1
    %v877 = vmul.f32 %v869, 0.1
    %v878 = vsel %vm870, %v866, %v874
    %v879 = vsel %vm871, %v867, %v875
    %v880 = vsel %vm872, %v868, %v876
    %v881 = vsel %vm873, %v869, %v877
    %v882 = vld [vmem:[%s7] sm:$0xff]
    %v883 = vld [vmem:[%s7 + $0x8] sm:$0xff]
    %v884 = vld [vmem:[%s7 + $0x10] sm:$0xff]
    %v885 = vld [vmem:[%s7 + $0x18] sm:$0xff]
    %v886 = vld [vmem:[%s7 + $0x20] sm:$0xff]
    %v887 = vld [vmem:[%s7 + $0x28] sm:$0xff]
    %v888 = vld [vmem:[%s7 + $0x30] sm:$0xff]
    %v889 = vld [vmem:[%s7 + $0x38] sm:$0xff]
    %v890 = vld [vmem:[%s7 + $0x40] sm:$0xff]
    %v891 = vld [vmem:[%s7 + $0x48] sm:$0xff]
    %v892 = vld [vmem:[%s7 + $0x50] sm:$0xff]
    %v893 = vld [vmem:[%s7 + $0x58] sm:$0xff]
    %v894 = vld [vmem:[%s7 + $0x60] sm:$0xff]
    %v895 = vld [vmem:[%s7 + $0x68] sm:$0xff]
    %v896 = vld [vmem:[%s7 + $0x70] sm:$0xff]
    %v897 = vld [vmem:[%s7 + $0x78] sm:$0xff]
    %v898 = vld [vmem:[%s7 + $0x80] sm:$0xff]
    %v899 = vld [vmem:[%s7 + $0x88] sm:$0xff]
    %v900 = vld [vmem:[%s7 + $0x90] sm:$0xff]
    %v901 = vld [vmem:[%s7 + $0x98] sm:$0xff]
    %v902 = vld [vmem:[%s7 + $0xa0] sm:$0xff]
    %v903 = vld [vmem:[%s7 + $0xa8] sm:$0xff]
    %v904 = vld [vmem:[%s7 + $0xb0] sm:$0xff]
    %v905 = vld [vmem:[%s7 + $0xb8] sm:$0xff]
    %v906 = vld [vmem:[%s7 + $0xc0] sm:$0xff]
    %v907 = vld [vmem:[%s7 + $0xc8] sm:$0xff]
    %v908 = vld [vmem:[%s7 + $0xd0] sm:$0xff]
    %v909 = vld [vmem:[%s7 + $0xd8] sm:$0xff]
    %v910 = vld [vmem:[%s7 + $0xe0] sm:$0xff]
    %v911 = vld [vmem:[%s7 + $0xe8] sm:$0xff]
    %v912 = vld [vmem:[%s7 + $0xf0] sm:$0xff]
    %v913 = vld [vmem:[%s7 + $0xf8] sm:$0xff]
    %v914 = vld [vmem:[%s7 + $0x100] sm:$0xff]
    %v915 = vld [vmem:[%s7 + $0x108] sm:$0xff]
    %v916 = vld [vmem:[%s7 + $0x110] sm:$0xff]
    %v917 = vld [vmem:[%s7 + $0x118] sm:$0xff]
    %v918 = vld [vmem:[%s7 + $0x120] sm:$0xff]
    %v919 = vld [vmem:[%s7 + $0x128] sm:$0xff]
    %v920 = vld [vmem:[%s7 + $0x130] sm:$0xff]
    %v921 = vld [vmem:[%s7 + $0x138] sm:$0xff]
    %v922 = vld [vmem:[%s7 + $0x140] sm:$0xff]
    %v923 = vld [vmem:[%s7 + $0x148] sm:$0xff]
    %v924 = vld [vmem:[%s7 + $0x150] sm:$0xff]
    %v925 = vld [vmem:[%s7 + $0x158] sm:$0xff]
    %v926 = vld [vmem:[%s7 + $0x160] sm:$0xff]
    %v927 = vld [vmem:[%s7 + $0x168] sm:$0xff]
    %v928 = vld [vmem:[%s7 + $0x170] sm:$0xff]
    %v929 = vld [vmem:[%s7 + $0x178] sm:$0xff]
    %v930 = vld [vmem:[%s7 + $0x180] sm:$0xff]
    %v931 = vld [vmem:[%s7 + $0x188] sm:$0xff]
    %v932 = vld [vmem:[%s7 + $0x190] sm:$0xff]
    %v933 = vld [vmem:[%s7 + $0x198] sm:$0xff]
    %v934 = vld [vmem:[%s7 + $0x1a0] sm:$0xff]
    %v935 = vld [vmem:[%s7 + $0x1a8] sm:$0xff]
    %v936 = vld [vmem:[%s7 + $0x1b0] sm:$0xff]
    %v937 = vld [vmem:[%s7 + $0x1b8] sm:$0xff]
    %v938 = vld [vmem:[%s7 + $0x1c0] sm:$0xff]
    %v939 = vld [vmem:[%s7 + $0x1c8] sm:$0xff]
    %v940 = vld [vmem:[%s7 + $0x1d0] sm:$0xff]
    %v941 = vld [vmem:[%s7 + $0x1d8] sm:$0xff]
    %v942 = vld [vmem:[%s7 + $0x1e0] sm:$0xff]
    %v943 = vld [vmem:[%s7 + $0x1e8] sm:$0xff]
    %v944 = vld [vmem:[%s7 + $0x1f0] sm:$0xff]
    %v945 = vld [vmem:[%s7 + $0x1f8] sm:$0xff]
    %946 = vmatprep.subr.mxu0 0.0
    %947 = vmatpush1.msra.mxu0 %v897
    %948 = vmatprep.subr.mxu0 0.0
    %949 = vmatpush1.msra.mxu0 %v896
    %950 = vmatprep.subr.mxu0 0.0
    %951 = vmatpush1.msra.mxu0 %v895
    %952 = vmatprep.subr.mxu0 0.0
    %953 = vmatpush1.msra.mxu0 %v894
    %954 = vmatprep.subr.mxu0 0.0
    %955 = vmatpush1.msra.mxu0 %v893
    %956 = vmatprep.subr.mxu0 0.0
    %957 = vmatpush1.msra.mxu0 %v892
    %958 = vmatprep.subr.mxu0 0.0
    %959 = vmatpush1.msra.mxu0 %v891
    %960 = vmatprep.subr.mxu0 0.0
    %961 = vmatpush1.msra.mxu0 %v890
    %962 = vmatprep.subr.mxu0 0.0
    %963 = vmatpush1.msra.mxu0 %v889
    %964 = vmatprep.subr.mxu0 0.0
    %965 = vmatpush1.msra.mxu0 %v888
    %966 = vmatprep.subr.mxu0 0.0
    %967 = vmatpush1.msra.mxu0 %v887
    %968 = vmatprep.subr.mxu0 0.0
    %969 = vmatpush1.msra.mxu0 %v886
    %970 = vmatprep.subr.mxu0 0.0
    %971 = vmatpush1.msra.mxu0 %v885
    %972 = vmatprep.subr.mxu0 0.0
    %973 = vmatpush1.msra.mxu0 %v884
    %974 = vmatprep.subr.mxu0 0.0
    %975 = vmatpush1.msra.mxu0 %v883
    %976 = vmatprep.subr.mxu0 0.0
    %977 = vmatpush1.msra.mxu0 %v882
    %978 = vmatprep.subr.mxu0 0.0
    %979 = vmatpush2.msra.mxu0 %v913
    %980 = vmatprep.subr.mxu0 0.0
    %981 = vmatpush2.msra.mxu0 %v912
    %982 = vmatprep.subr.mxu0 0.0
    %983 = vmatpush2.msra.mxu0 %v911
    %984 = vmatprep.subr.mxu0 0.0
    %985 = vmatpush2.msra.mxu0 %v910
    %986 = vmatprep.subr.mxu0 0.0
    %987 = vmatpush2.msra.mxu0 %v909
    %988 = vmatprep.subr.mxu0 0.0
    %989 = vmatpush2.msra.mxu0 %v908
    %990 = vmatprep.subr.mxu0 0.0
    %991 = vmatpush2.msra.mxu0 %v907
    %992 = vmatprep.subr.mxu0 0.0
    %993 = vmatpush2.msra.mxu0 %v906
    %994 = vmatprep.subr.mxu0 0.0
    %995 = vmatpush2.msra.mxu0 %v905
    %996 = vmatprep.subr.mxu0 0.0
    %997 = vmatpush2.msra.mxu0 %v904
    %998 = vmatprep.subr.mxu0 0.0
    %999 = vmatpush2.msra.mxu0 %v903
    %1000 = vmatprep.subr.mxu0 0.0
    %1001 = vmatpush2.msra.mxu0 %v902
    %1002 = vmatprep.subr.mxu0 0.0
    %1003 = vmatpush2.msra.mxu0 %v901
    %1004 = vmatprep.subr.mxu0 0.0
    %1005 = vmatpush2.msra.mxu0 %v900
    %1006 = vmatprep.subr.mxu0 0.0
    %1007 = vmatpush2.msra.mxu0 %v899
    %1008 = vmatprep.subr.mxu0 0.0
    %1009 = vmatpush2.msra.mxu0 %v898
    %1010 = vmatprep.mubr.f32.mxu0 %v879
    %1011 = vmatmul.mubr.f32.gmra.mxu0 %v878
    %v1012 = vpop.f32.mrf.mxu0
    %v1013 = vadd.f32 0.0, %v1012
    %v1014 = vpop.f32.mrf.mxu0
    %1015 = vdwg.mxu0
    %1016 = vmatprep.subr.mxu0 0.0
    %1017 = vmatpush1.msra.mxu0 %v929
    %1018 = vmatprep.subr.mxu0 0.0
    %1019 = vmatpush1.msra.mxu0 %v928
    %1020 = vmatprep.subr.mxu0 0.0
    %1021 = vmatpush1.msra.mxu0 %v927
    %1022 = vmatprep.subr.mxu0 0.0
    %1023 = vmatpush1.msra.mxu0 %v926
    %1024 = vmatprep.subr.mxu0 0.0
    %1025 = vmatpush1.msra.mxu0 %v925
    %1026 = vmatprep.subr.mxu0 0.0
    %1027 = vmatpush1.msra.mxu0 %v924
    %1028 = vmatprep.subr.mxu0 0.0
    %1029 = vmatpush1.msra.mxu0 %v923
    %1030 = vmatprep.subr.mxu0 0.0
    %1031 = vmatpush1.msra.mxu0 %v922
    %1032 = vmatprep.subr.mxu0 0.0
    %1033 = vmatpush1.msra.mxu0 %v921
    %1034 = vmatprep.subr.mxu0 0.0
    %1035 = vmatpush1.msra.mxu0 %v920
    %1036 = vmatprep.subr.mxu0 0.0
    %1037 = vmatpush1.msra.mxu0 %v919
    %1038 = vmatprep.subr.mxu0 0.0
    %1039 = vmatpush1.msra.mxu0 %v918
    %1040 = vmatprep.subr.mxu0 0.0
    %1041 = vmatpush1.msra.mxu0 %v917
    %1042 = vmatprep.subr.mxu0 0.0
    %1043 = vmatpush1.msra.mxu0 %v916
    %1044 = vmatprep.subr.mxu0 0.0
    %1045 = vmatpush1.msra.mxu0 %v915
    %1046 = vmatprep.subr.mxu0 0.0
    %1047 = vmatpush1.msra.mxu0 %v914
    %1048 = vmatprep.subr.mxu0 0.0
    %1049 = vmatpush2.msra.mxu0 %v945
    %1050 = vmatprep.subr.mxu0 0.0
    %1051 = vmatpush2.msra.mxu0 %v944
    %1052 = vmatprep.subr.mxu0 0.0
    %1053 = vmatpush2.msra.mxu0 %v943
    %1054 = vmatprep.subr.mxu0 0.0
    %1055 = vmatpush2.msra.mxu0 %v942
    %1056 = vmatprep.subr.mxu0 0.0
    %1057 = vmatpush2.msra.mxu0 %v941
    %1058 = vmatprep.subr.mxu0 0.0
    %1059 = vmatpush2.msra.mxu0 %v940
    %1060 = vmatprep.subr.mxu0 0.0
    %1061 = vmatpush2.msra.mxu0 %v939
    %1062 = vmatprep.subr.mxu0 0.0
    %1063 = vmatpush2.msra.mxu0 %v938
    %1064 = vmatprep.subr.mxu0 0.0
    %1065 = vmatpush2.msra.mxu0 %v937
    %1066 = vmatprep.subr.mxu0 0.0
    %1067 = vmatpush2.msra.mxu0 %v936
    %1068 = vmatprep.subr.mxu0 0.0
    %1069 = vmatpush2.msra.mxu0 %v935
    %1070 = vmatprep.subr.mxu0 0.0
    %1071 = vmatpush2.msra.mxu0 %v934
    %1072 = vmatprep.subr.mxu0 0.0
    %1073 = vmatpush2.msra.mxu0 %v933
    %1074 = vmatprep.subr.mxu0 0.0
    %1075 = vmatpush2.msra.mxu0 %v932
    %1076 = vmatprep.subr.mxu0 0.0
    %1077 = vmatpush2.msra.mxu0 %v931
    %1078 = vmatprep.subr.mxu0 0.0
    %1079 = vmatpush2.msra.mxu0 %v930
    %1080 = vmatprep.mubr.f32.mxu0 %v881
    %1081 = vmatmul.mubr.f32.gmra.mxu0 %v880
    %v1082 = vpop.f32.mrf.mxu0
    %v1083 = vadd.f32 %v1013, %v1082
    %v1084 = vpop.f32.mrf.mxu0
    %1085 = vdwg.mxu0
    %v1086 = vld [vmem:[%s6] sm:$0xff]
    %v1087 = vld [vmem:[%s6 + $0x8] sm:$0xff]
    %v1088 = vld [vmem:[%s6 + $0x10] sm:$0xff]
    %v1089 = vld [vmem:[%s6 + $0x18] sm:$0xff]
    %v1090 = vld [vmem:[%s6 + $0x20] sm:$0xff]
    %v1091 = vld [vmem:[%s6 + $0x28] sm:$0xff]
    %v1092 = vld [vmem:[%s6 + $0x30] sm:$0xff]
    %v1093 = vld [vmem:[%s6 + $0x38] sm:$0xff]
    %v1094 = vld [vmem:[%s6 + $0x40] sm:$0xff]
    %v1095 = vld [vmem:[%s2] sm:$0xff]
    %1096 = vrot.lane.b32.xlu0 %v1083, 9
    %v1097 = vpop.permute.xlu0 %1096
    %1098 = vrot.lane.b32.xlu0 %v1083, 8
    %v1099 = vpop.permute.xlu0 %1098
    %1100 = vrot.lane.b32.xlu0 %v1083, 7
    %v1101 = vpop.permute.xlu0 %1100
    %1102 = vrot.lane.b32.xlu0 %v1083, 1
    %v1103 = vpop.permute.xlu0 %1102
    %1104 = vrot.lane.b32.xlu0 %v1083, 127
    %v1105 = vpop.permute.xlu0 %1104
    %1106 = vrot.lane.b32.xlu0 %v1083, 121
    %v1107 = vpop.permute.xlu0 %1106
    %1108 = vrot.lane.b32.xlu0 %v1083, 120
    %v1109 = vpop.permute.xlu0 %1108
    %1110 = vrot.lane.b32.xlu0 %v1083, 119
    %v1111 = vpop.permute.xlu0 %1110
    %v1112 = vmul.f32 %v1097, %v1086
    %v1113 = vmul.f32 %v1099, %v1087
    %v1114 = vmul.f32 %v1101, %v1088
    %v1115 = vmul.f32 %v1103, %v1089
    %v1116 = vmul.f32 %v1083, %v1090
    %v1117 = vmul.f32 %v1105, %v1091
    %v1118 = vmul.f32 %v1107, %v1092
    %v1119 = vmul.f32 %v1109, %v1093
    %v1120 = vmul.f32 %v1111, %v1094
    %vm1121 = vcmask 588800
    %v1123 = vsel %vm1121, %v1095, 0
    %1125 = vmatprep.subr.mxu0 0.0
    %1126 = vmatpush1.msra.mxu0 0.0
    %1127 = vmatprep.subr.mxu0 0.0
    %1128 = vmatpush1.msra.mxu0 0.0
    %1129 = vmatprep.subr.mxu0 0.0
    %1130 = vmatpush1.msra.mxu0 0.0
    %1131 = vmatprep.subr.mxu0 0.0
    %1132 = vmatpush1.msra.mxu0 0.0
    %1133 = vmatprep.subr.mxu0 0.0
    %1134 = vmatpush1.msra.mxu0 0.0
    %1135 = vmatprep.subr.mxu0 0.0
    %1136 = vmatpush1.msra.mxu0 0.0
    %1137 = vmatprep.subr.mxu0 0.0
    %1138 = vmatpush1.msra.mxu0 0.0
    %1139 = vmatprep.subr.mxu0 0.0
    %1140 = vmatpush1.msra.mxu0 %v1120
    %1141 = vmatprep.subr.mxu0 0.0
    %1142 = vmatpush1.msra.mxu0 %v1119
    %1143 = vmatprep.subr.mxu0 0.0
    %1144 = vmatpush1.msra.mxu0 %v1118
    %1145 = vmatprep.subr.mxu0 0.0
    %1146 = vmatpush1.msra.mxu0 %v1117
    %1147 = vmatprep.subr.mxu0 0.0
    %1148 = vmatpush1.msra.mxu0 %v1116
    %1149 = vmatprep.subr.mxu0 0.0
    %1150 = vmatpush1.msra.mxu0 %v1115
    %1151 = vmatprep.subr.mxu0 0.0
    %1152 = vmatpush1.msra.mxu0 %v1114
    %1153 = vmatprep.subr.mxu0 0.0
    %1154 = vmatpush1.msra.mxu0 %v1113
    %1155 = vmatprep.subr.mxu0 0.0
    %1156 = vmatpush1.msra.mxu0 %v1112
    %1157 = vmatprep.subr.mxu0 0.0
    %1158 = vmatpush2.msra.mxu0 0.0
    %1159 = vmatprep.subr.mxu0 0.0
    %1160 = vmatpush2.msra.mxu0 0.0
    %1161 = vmatprep.subr.mxu0 0.0
    %1162 = vmatpush2.msra.mxu0 0.0
    %1163 = vmatprep.subr.mxu0 0.0
    %1164 = vmatpush2.msra.mxu0 0.0
    %1165 = vmatprep.subr.mxu0 0.0
    %1166 = vmatpush2.msra.mxu0 0.0
    %1167 = vmatprep.subr.mxu0 0.0
    %1168 = vmatpush2.msra.mxu0 0.0
    %1169 = vmatprep.subr.mxu0 0.0
    %1170 = vmatpush2.msra.mxu0 0.0
    %1171 = vmatprep.subr.mxu0 0.0
    %1172 = vmatpush2.msra.mxu0 0.0
    %1173 = vmatprep.subr.mxu0 0.0
    %1174 = vmatpush2.msra.mxu0 0.0
    %1175 = vmatprep.subr.mxu0 0.0
    %1176 = vmatpush2.msra.mxu0 0.0
    %1177 = vmatprep.subr.mxu0 0.0
    %1178 = vmatpush2.msra.mxu0 0.0
    %1179 = vmatprep.subr.mxu0 0.0
    %1180 = vmatpush2.msra.mxu0 0.0
    %1181 = vmatprep.subr.mxu0 0.0
    %1182 = vmatpush2.msra.mxu0 0.0
    %1183 = vmatprep.subr.mxu0 0.0
    %1184 = vmatpush2.msra.mxu0 0.0
    %1185 = vmatprep.subr.mxu0 0.0
    %1186 = vmatpush2.msra.mxu0 0.0
    %1187 = vmatprep.subr.mxu0 0.0
    %1188 = vmatpush2.msra.mxu0 0.0
    %1189 = vmatprep.mubr.f32.mxu0 0.0
    %1190 = vmatmul.mubr.f32.gmra.mxu0 %v1123
    %v1191 = vpop.f32.mrf.mxu0
    %v1192 = vadd.f32 0.0, %v1191
    %v1193 = vpop.f32.mrf.mxu0
    %1194 = vdwg.mxu0
    %1195 = vadd.xlane.f32.xlu0 %v1192
    %v1196 = vpop.xlane.xlu0 %1195
    %v1197 = vrcp.pop 128.0
    %v1198 = vmul.f32 %v1196, %v1197
    %v1199 = vsub.f32 %v1192, %v1198
    %v1200 = vmul.f32 %v1199, %v1199
    %1201 = vadd.xlane.f32.xlu0 %v1200
    %v1202 = vpop.xlane.xlu0 %1201
    %v1203 = vmul.f32 %v1202, %v1197
    %v1204 = vadd.f32 %v1203, 1e-05
    %v1205 = vrsqrt.pop %v1204
    %v1206 = vmul.f32 %v828, %v1205
    %1208 = vset.pattern.permute.xlu0 2
    %1209 = vperm.xlu0 %1208, %v1206
    %v1210 = vpop.permute.xlu0 %1209
    %v1212 = vmul.f32 %v1199, %v1210
    %1213 = vset.pattern.permute.xlu0 3
    %1214 = vperm.xlu0 %1213, %v828
    %v1215 = vpop.permute.xlu0 %1214
    %v1217 = vadd.f32 %v1212, %v1215
    %vm1218 = vcmp.gt.f32.partialorder %v1217, 0.0
    %v1219 = vmul.f32 %v1217, 0.1
    %v1220 = vsel %vm1218, %v1217, %v1219
    %s1221 = scalar_lea.vmem %s2, 8
    %v1222 = vld [vmem:[%s1221] sm:$0xff]
    %1223 = vrot.lane.b32.xlu0 %v1220, 9
    %v1224 = vpop.permute.xlu0 %1223
    %1225 = vrot.lane.b32.xlu0 %v1220, 8
    %v1226 = vpop.permute.xlu0 %1225
    %1227 = vrot.lane.b32.xlu0 %v1220, 7
    %v1228 = vpop.permute.xlu0 %1227
    %1229 = vrot.lane.b32.xlu0 %v1220, 1
    %v1230 = vpop.permute.xlu0 %1229
    %1231 = vrot.lane.b32.xlu0 %v1220, 127
    %v1232 = vpop.permute.xlu0 %1231
    %1233 = vrot.lane.b32.xlu0 %v1220, 121
    %v1234 = vpop.permute.xlu0 %1233
    %1235 = vrot.lane.b32.xlu0 %v1220, 120
    %v1236 = vpop.permute.xlu0 %1235
    %1237 = vrot.lane.b32.xlu0 %v1220, 119
    %v1238 = vpop.permute.xlu0 %1237
    %v1239 = vmul.f32 %v1224, %v1086
    %v1240 = vmul.f32 %v1226, %v1087
    %v1241 = vmul.f32 %v1228, %v1088
    %v1242 = vmul.f32 %v1230, %v1089
    %v1243 = vmul.f32 %v1220, %v1090
    %v1244 = vmul.f32 %v1232, %v1091
    %v1245 = vmul.f32 %v1234, %v1092
    %v1246 = vmul.f32 %v1236, %v1093
    %v1247 = vmul.f32 %v1238, %v1094
    %v1249 = vsel %vm1121, %v1222, 0
    %1251 = vmatprep.subr.mxu0 0.0
    %1252 = vmatpush1.msra.mxu0 0.0
    %1253 = vmatprep.subr.mxu0 0.0
    %1254 = vmatpush1.msra.mxu0 0.0
    %1255 = vmatprep.subr.mxu0 0.0
    %1256 = vmatpush1.msra.mxu0 0.0
    %1257 = vmatprep.subr.mxu0 0.0
    %1258 = vmatpush1.msra.mxu0 0.0
    %1259 = vmatprep.subr.mxu0 0.0
    %1260 = vmatpush1.msra.mxu0 0.0
    %1261 = vmatprep.subr.mxu0 0.0
    %1262 = vmatpush1.msra.mxu0 0.0
    %1263 = vmatprep.subr.mxu0 0.0
    %1264 = vmatpush1.msra.mxu0 0.0
    %1265 = vmatprep.subr.mxu0 0.0
    %1266 = vmatpush1.msra.mxu0 %v1247
    %1267 = vmatprep.subr.mxu0 0.0
    %1268 = vmatpush1.msra.mxu0 %v1246
    %1269 = vmatprep.subr.mxu0 0.0
    %1270 = vmatpush1.msra.mxu0 %v1245
    %1271 = vmatprep.subr.mxu0 0.0
    %1272 = vmatpush1.msra.mxu0 %v1244
    %1273 = vmatprep.subr.mxu0 0.0
    %1274 = vmatpush1.msra.mxu0 %v1243
    %1275 = vmatprep.subr.mxu0 0.0
    %1276 = vmatpush1.msra.mxu0 %v1242
    %1277 = vmatprep.subr.mxu0 0.0
    %1278 = vmatpush1.msra.mxu0 %v1241
    %1279 = vmatprep.subr.mxu0 0.0
    %1280 = vmatpush1.msra.mxu0 %v1240
    %1281 = vmatprep.subr.mxu0 0.0
    %1282 = vmatpush1.msra.mxu0 %v1239
    %1283 = vmatprep.subr.mxu0 0.0
    %1284 = vmatpush2.msra.mxu0 0.0
    %1285 = vmatprep.subr.mxu0 0.0
    %1286 = vmatpush2.msra.mxu0 0.0
    %1287 = vmatprep.subr.mxu0 0.0
    %1288 = vmatpush2.msra.mxu0 0.0
    %1289 = vmatprep.subr.mxu0 0.0
    %1290 = vmatpush2.msra.mxu0 0.0
    %1291 = vmatprep.subr.mxu0 0.0
    %1292 = vmatpush2.msra.mxu0 0.0
    %1293 = vmatprep.subr.mxu0 0.0
    %1294 = vmatpush2.msra.mxu0 0.0
    %1295 = vmatprep.subr.mxu0 0.0
    %1296 = vmatpush2.msra.mxu0 0.0
    %1297 = vmatprep.subr.mxu0 0.0
    %1298 = vmatpush2.msra.mxu0 0.0
    %1299 = vmatprep.subr.mxu0 0.0
    %1300 = vmatpush2.msra.mxu0 0.0
    %1301 = vmatprep.subr.mxu0 0.0
    %1302 = vmatpush2.msra.mxu0 0.0
    %1303 = vmatprep.subr.mxu0 0.0
    %1304 = vmatpush2.msra.mxu0 0.0
    %1305 = vmatprep.subr.mxu0 0.0
    %1306 = vmatpush2.msra.mxu0 0.0
    %1307 = vmatprep.subr.mxu0 0.0
    %1308 = vmatpush2.msra.mxu0 0.0
    %1309 = vmatprep.subr.mxu0 0.0
    %1310 = vmatpush2.msra.mxu0 0.0
    %1311 = vmatprep.subr.mxu0 0.0
    %1312 = vmatpush2.msra.mxu0 0.0
    %1313 = vmatprep.subr.mxu0 0.0
    %1314 = vmatpush2.msra.mxu0 0.0
    %1315 = vmatprep.mubr.f32.mxu0 0.0
    %1316 = vmatmul.mubr.f32.gmra.mxu0 %v1249
    %v1317 = vpop.f32.mrf.mxu0
    %v1318 = vadd.f32 0.0, %v1317
    %v1319 = vpop.f32.mrf.mxu0
    %1320 = vdwg.mxu0
    %1321 = vadd.xlane.f32.xlu0 %v1318
    %v1322 = vpop.xlane.xlu0 %1321
    %v1323 = vmul.f32 %v1322, %v1197
    %v1324 = vsub.f32 %v1318, %v1323
    %v1325 = vmul.f32 %v1324, %v1324
    %1326 = vadd.xlane.f32.xlu0 %v1325
    %v1327 = vpop.xlane.xlu0 %1326
    %v1328 = vmul.f32 %v1327, %v1197
    %v1329 = vadd.f32 %v1328, 1e-05
    %v1330 = vrsqrt.pop %v1329
    %v1331 = vmul.f32 %v828, %v1330
    %1333 = vset.pattern.permute.xlu0 4
    %1334 = vperm.xlu0 %1333, %v1331
    %v1335 = vpop.permute.xlu0 %1334
    %v1337 = vmul.f32 %v1324, %v1335
    %1338 = vset.pattern.permute.xlu0 5
    %1339 = vperm.xlu0 %1338, %v828
    %v1340 = vpop.permute.xlu0 %1339
    %v1342 = vadd.f32 %v1337, %v1340
    %vm1343 = vcmp.gt.f32.partialorder %v1342, 0.0
    %v1344 = vmul.f32 %v1342, 0.1
    %v1345 = vsel %vm1343, %v1342, %v1344
    %v1346 = vld [vmem:[%s9] sm:$0xff]
    %v1347 = vld [vmem:[%s9 + $0x8] sm:$0xff]
    %v1348 = vld [vmem:[%s9 + $0x10] sm:$0xff]
    %v1349 = vld [vmem:[%s9 + $0x18] sm:$0xff]
    %v1350 = vld [vmem:[%s9 + $0x20] sm:$0xff]
    %v1351 = vld [vmem:[%s9 + $0x28] sm:$0xff]
    %v1352 = vld [vmem:[%s9 + $0x30] sm:$0xff]
    %v1353 = vld [vmem:[%s9 + $0x38] sm:$0xff]
    %v1354 = vld [vmem:[%s9 + $0x40] sm:$0xff]
    %v1355 = vld [vmem:[%s9 + $0x48] sm:$0xff]
    %v1356 = vld [vmem:[%s9 + $0x50] sm:$0xff]
    %v1357 = vld [vmem:[%s9 + $0x58] sm:$0xff]
    %v1358 = vld [vmem:[%s9 + $0x60] sm:$0xff]
    %v1359 = vld [vmem:[%s9 + $0x68] sm:$0xff]
    %v1360 = vld [vmem:[%s9 + $0x70] sm:$0xff]
    %v1361 = vld [vmem:[%s9 + $0x78] sm:$0xff]
    %1362 = vmatprep.subr.mxu0 0.0
    %1363 = vmatpush1.msra.mxu0 %v1361
    %1364 = vmatprep.subr.mxu0 0.0
    %1365 = vmatpush1.msra.mxu0 %v1360
    %1366 = vmatprep.subr.mxu0 0.0
    %1367 = vmatpush1.msra.mxu0 %v1359
    %1368 = vmatprep.subr.mxu0 0.0
    %1369 = vmatpush1.msra.mxu0 %v1358
    %1370 = vmatprep.subr.mxu0 0.0
    %1371 = vmatpush1.msra.mxu0 %v1357
    %1372 = vmatprep.subr.mxu0 0.0
    %1373 = vmatpush1.msra.mxu0 %v1356
    %1374 = vmatprep.subr.mxu0 0.0
    %1375 = vmatpush1.msra.mxu0 %v1355
    %1376 = vmatprep.subr.mxu0 0.0
    %1377 = vmatpush1.msra.mxu0 %v1354
    %1378 = vmatprep.subr.mxu0 0.0
    %1379 = vmatpush1.msra.mxu0 %v1353
    %1380 = vmatprep.subr.mxu0 0.0
    %1381 = vmatpush1.msra.mxu0 %v1352
    %1382 = vmatprep.subr.mxu0 0.0
    %1383 = vmatpush1.msra.mxu0 %v1351
    %1384 = vmatprep.subr.mxu0 0.0
    %1385 = vmatpush1.msra.mxu0 %v1350
    %1386 = vmatprep.subr.mxu0 0.0
    %1387 = vmatpush1.msra.mxu0 %v1349
    %1388 = vmatprep.subr.mxu0 0.0
    %1389 = vmatpush1.msra.mxu0 %v1348
    %1390 = vmatprep.subr.mxu0 0.0
    %1391 = vmatpush1.msra.mxu0 %v1347
    %1392 = vmatprep.subr.mxu0 0.0
    %1393 = vmatpush1.msra.mxu0 %v1346
    %1394 = vmatprep.subr.mxu0 0.0
    %1395 = vmatpush2.msra.mxu0 0.0
    %1396 = vmatprep.subr.mxu0 0.0
    %1397 = vmatpush2.msra.mxu0 0.0
    %1398 = vmatprep.subr.mxu0 0.0
    %1399 = vmatpush2.msra.mxu0 0.0
    %1400 = vmatprep.subr.mxu0 0.0
    %1401 = vmatpush2.msra.mxu0 0.0
    %1402 = vmatprep.subr.mxu0 0.0
    %1403 = vmatpush2.msra.mxu0 0.0
    %1404 = vmatprep.subr.mxu0 0.0
    %1405 = vmatpush2.msra.mxu0 0.0
    %1406 = vmatprep.subr.mxu0 0.0
    %1407 = vmatpush2.msra.mxu0 0.0
    %1408 = vmatprep.subr.mxu0 0.0
    %1409 = vmatpush2.msra.mxu0 0.0
    %1410 = vmatprep.subr.mxu0 0.0
    %1411 = vmatpush2.msra.mxu0 0.0
    %1412 = vmatprep.subr.mxu0 0.0
    %1413 = vmatpush2.msra.mxu0 0.0
    %1414 = vmatprep.subr.mxu0 0.0
    %1415 = vmatpush2.msra.mxu0 0.0
    %1416 = vmatprep.subr.mxu0 0.0
    %1417 = vmatpush2.msra.mxu0 0.0
    %1418 = vmatprep.subr.mxu0 0.0
    %1419 = vmatpush2.msra.mxu0 0.0
    %1420 = vmatprep.subr.mxu0 0.0
    %1421 = vmatpush2.msra.mxu0 0.0
    %1422 = vmatprep.subr.mxu0 0.0
    %1423 = vmatpush2.msra.mxu0 0.0
    %1424 = vmatprep.subr.mxu0 0.0
    %1425 = vmatpush2.msra.mxu0 0.0
    %1426 = vmatprep.mubr.f32.mxu0 0.0
    %1427 = vmatmul.mubr.f32.gmra.mxu0 %v1345
    %v1428 = vpop.f32.mrf.mxu0
    %v1429 = vadd.f32 0.0, %v1428
    %v1430 = vpop.f32.mrf.mxu0
    %1431 = vdwg.mxu0
    %s1432 = scalar_lea.vmem %s9, 128
    %v1433 = vld [vmem:[%s1432] sm:$0xff]
    %v1434 = vld [vmem:[%s1432 + $0x8] sm:$0xff]
    %v1435 = vld [vmem:[%s1432 + $0x10] sm:$0xff]
    %v1436 = vld [vmem:[%s1432 + $0x18] sm:$0xff]
    %v1437 = vld [vmem:[%s1432 + $0x20] sm:$0xff]
    %v1438 = vld [vmem:[%s1432 + $0x28] sm:$0xff]
    %v1439 = vld [vmem:[%s1432 + $0x30] sm:$0xff]
    %v1440 = vld [vmem:[%s1432 + $0x38] sm:$0xff]
    %v1441 = vld [vmem:[%s1432 + $0x40] sm:$0xff]
    %v1442 = vld [vmem:[%s1432 + $0x48] sm:$0xff]
    %v1443 = vld [vmem:[%s1432 + $0x50] sm:$0xff]
    %v1444 = vld [vmem:[%s1432 + $0x58] sm:$0xff]
    %v1445 = vld [vmem:[%s1432 + $0x60] sm:$0xff]
    %v1446 = vld [vmem:[%s1432 + $0x68] sm:$0xff]
    %v1447 = vld [vmem:[%s1432 + $0x70] sm:$0xff]
    %v1448 = vld [vmem:[%s1432 + $0x78] sm:$0xff]
    %1449 = vmatprep.subr.mxu0 0.0
    %1450 = vmatpush1.msra.mxu0 %v1448
    %1451 = vmatprep.subr.mxu0 0.0
    %1452 = vmatpush1.msra.mxu0 %v1447
    %1453 = vmatprep.subr.mxu0 0.0
    %1454 = vmatpush1.msra.mxu0 %v1446
    %1455 = vmatprep.subr.mxu0 0.0
    %1456 = vmatpush1.msra.mxu0 %v1445
    %1457 = vmatprep.subr.mxu0 0.0
    %1458 = vmatpush1.msra.mxu0 %v1444
    %1459 = vmatprep.subr.mxu0 0.0
    %1460 = vmatpush1.msra.mxu0 %v1443
    %1461 = vmatprep.subr.mxu0 0.0
    %1462 = vmatpush1.msra.mxu0 %v1442
    %1463 = vmatprep.subr.mxu0 0.0
    %1464 = vmatpush1.msra.mxu0 %v1441
    %1465 = vmatprep.subr.mxu0 0.0
    %1466 = vmatpush1.msra.mxu0 %v1440
    %1467 = vmatprep.subr.mxu0 0.0
    %1468 = vmatpush1.msra.mxu0 %v1439
    %1469 = vmatprep.subr.mxu0 0.0
    %1470 = vmatpush1.msra.mxu0 %v1438
    %1471 = vmatprep.subr.mxu0 0.0
    %1472 = vmatpush1.msra.mxu0 %v1437
    %1473 = vmatprep.subr.mxu0 0.0
    %1474 = vmatpush1.msra.mxu0 %v1436
    %1475 = vmatprep.subr.mxu0 0.0
    %1476 = vmatpush1.msra.mxu0 %v1435
    %1477 = vmatprep.subr.mxu0 0.0
    %1478 = vmatpush1.msra.mxu0 %v1434
    %1479 = vmatprep.subr.mxu0 0.0
    %1480 = vmatpush1.msra.mxu0 %v1433
    %1481 = vmatprep.subr.mxu0 0.0
    %1482 = vmatpush2.msra.mxu0 0.0
    %1483 = vmatprep.subr.mxu0 0.0
    %1484 = vmatpush2.msra.mxu0 0.0
    %1485 = vmatprep.subr.mxu0 0.0
    %1486 = vmatpush2.msra.mxu0 0.0
    %1487 = vmatprep.subr.mxu0 0.0
    %1488 = vmatpush2.msra.mxu0 0.0
    %1489 = vmatprep.subr.mxu0 0.0
    %1490 = vmatpush2.msra.mxu0 0.0
    %1491 = vmatprep.subr.mxu0 0.0
    %1492 = vmatpush2.msra.mxu0 0.0
    %1493 = vmatprep.subr.mxu0 0.0
    %1494 = vmatpush2.msra.mxu0 0.0
    %1495 = vmatprep.subr.mxu0 0.0
    %1496 = vmatpush2.msra.mxu0 0.0
    %1497 = vmatprep.subr.mxu0 0.0
    %1498 = vmatpush2.msra.mxu0 0.0
    %1499 = vmatprep.subr.mxu0 0.0
    %1500 = vmatpush2.msra.mxu0 0.0
    %1501 = vmatprep.subr.mxu0 0.0
    %1502 = vmatpush2.msra.mxu0 0.0
    %1503 = vmatprep.subr.mxu0 0.0
    %1504 = vmatpush2.msra.mxu0 0.0
    %1505 = vmatprep.subr.mxu0 0.0
    %1506 = vmatpush2.msra.mxu0 0.0
    %1507 = vmatprep.subr.mxu0 0.0
    %1508 = vmatpush2.msra.mxu0 0.0
    %1509 = vmatprep.subr.mxu0 0.0
    %1510 = vmatpush2.msra.mxu0 0.0
    %1511 = vmatprep.subr.mxu0 0.0
    %1512 = vmatpush2.msra.mxu0 0.0
    %1513 = vmatprep.mubr.f32.mxu0 0.0
    %1514 = vmatmul.mubr.f32.gmra.mxu0 %v1345
    %v1515 = vpop.f32.mrf.mxu0
    %v1516 = vadd.f32 0.0, %v1515
    %v1517 = vpop.f32.mrf.mxu0
    %1518 = vdwg.mxu0
    %s1519 = scalar_lea.vmem %s9, 256
    %v1520 = vld [vmem:[%s1519] sm:$0xff]
    %v1521 = vld [vmem:[%s1519 + $0x8] sm:$0xff]
    %v1522 = vld [vmem:[%s1519 + $0x10] sm:$0xff]
    %v1523 = vld [vmem:[%s1519 + $0x18] sm:$0xff]
    %v1524 = vld [vmem:[%s1519 + $0x20] sm:$0xff]
    %v1525 = vld [vmem:[%s1519 + $0x28] sm:$0xff]
    %v1526 = vld [vmem:[%s1519 + $0x30] sm:$0xff]
    %v1527 = vld [vmem:[%s1519 + $0x38] sm:$0xff]
    %v1528 = vld [vmem:[%s1519 + $0x40] sm:$0xff]
    %v1529 = vld [vmem:[%s1519 + $0x48] sm:$0xff]
    %v1530 = vld [vmem:[%s1519 + $0x50] sm:$0xff]
    %v1531 = vld [vmem:[%s1519 + $0x58] sm:$0xff]
    %v1532 = vld [vmem:[%s1519 + $0x60] sm:$0xff]
    %v1533 = vld [vmem:[%s1519 + $0x68] sm:$0xff]
    %v1534 = vld [vmem:[%s1519 + $0x70] sm:$0xff]
    %v1535 = vld [vmem:[%s1519 + $0x78] sm:$0xff]
    %1536 = vmatprep.subr.mxu0 0.0
    %1537 = vmatpush1.msra.mxu0 %v1535
    %1538 = vmatprep.subr.mxu0 0.0
    %1539 = vmatpush1.msra.mxu0 %v1534
    %1540 = vmatprep.subr.mxu0 0.0
    %1541 = vmatpush1.msra.mxu0 %v1533
    %1542 = vmatprep.subr.mxu0 0.0
    %1543 = vmatpush1.msra.mxu0 %v1532
    %1544 = vmatprep.subr.mxu0 0.0
    %1545 = vmatpush1.msra.mxu0 %v1531
    %1546 = vmatprep.subr.mxu0 0.0
    %1547 = vmatpush1.msra.mxu0 %v1530
    %1548 = vmatprep.subr.mxu0 0.0
    %1549 = vmatpush1.msra.mxu0 %v1529
    %1550 = vmatprep.subr.mxu0 0.0
    %1551 = vmatpush1.msra.mxu0 %v1528
    %1552 = vmatprep.subr.mxu0 0.0
    %1553 = vmatpush1.msra.mxu0 %v1527
    %1554 = vmatprep.subr.mxu0 0.0
    %1555 = vmatpush1.msra.mxu0 %v1526
    %1556 = vmatprep.subr.mxu0 0.0
    %1557 = vmatpush1.msra.mxu0 %v1525
    %1558 = vmatprep.subr.mxu0 0.0
    %1559 = vmatpush1.msra.mxu0 %v1524
    %1560 = vmatprep.subr.mxu0 0.0
    %1561 = vmatpush1.msra.mxu0 %v1523
    %1562 = vmatprep.subr.mxu0 0.0
    %1563 = vmatpush1.msra.mxu0 %v1522
    %1564 = vmatprep.subr.mxu0 0.0
    %1565 = vmatpush1.msra.mxu0 %v1521
    %1566 = vmatprep.subr.mxu0 0.0
    %1567 = vmatpush1.msra.mxu0 %v1520
    %1568 = vmatprep.subr.mxu0 0.0
    %1569 = vmatpush2.msra.mxu0 0.0
    %1570 = vmatprep.subr.mxu0 0.0
    %1571 = vmatpush2.msra.mxu0 0.0
    %1572 = vmatprep.subr.mxu0 0.0
    %1573 = vmatpush2.msra.mxu0 0.0
    %1574 = vmatprep.subr.mxu0 0.0
    %1575 = vmatpush2.msra.mxu0 0.0
    %1576 = vmatprep.subr.mxu0 0.0
    %1577 = vmatpush2.msra.mxu0 0.0
    %1578 = vmatprep.subr.mxu0 0.0
    %1579 = vmatpush2.msra.mxu0 0.0
    %1580 = vmatprep.subr.mxu0 0.0
    %1581 = vmatpush2.msra.mxu0 0.0
    %1582 = vmatprep.subr.mxu0 0.0
    %1583 = vmatpush2.msra.mxu0 0.0
    %1584 = vmatprep.subr.mxu0 0.0
    %1585 = vmatpush2.msra.mxu0 0.0
    %1586 = vmatprep.subr.mxu0 0.0
    %1587 = vmatpush2.msra.mxu0 0.0
    %1588 = vmatprep.subr.mxu0 0.0
    %1589 = vmatpush2.msra.mxu0 0.0
    %1590 = vmatprep.subr.mxu0 0.0
    %1591 = vmatpush2.msra.mxu0 0.0
    %1592 = vmatprep.subr.mxu0 0.0
    %1593 = vmatpush2.msra.mxu0 0.0
    %1594 = vmatprep.subr.mxu0 0.0
    %1595 = vmatpush2.msra.mxu0 0.0
    %1596 = vmatprep.subr.mxu0 0.0
    %1597 = vmatpush2.msra.mxu0 0.0
    %1598 = vmatprep.subr.mxu0 0.0
    %1599 = vmatpush2.msra.mxu0 0.0
    %1600 = vmatprep.mubr.f32.mxu0 0.0
    %1601 = vmatmul.mubr.f32.gmra.mxu0 %v1345
    %v1602 = vpop.f32.mrf.mxu0
    %v1603 = vadd.f32 0.0, %v1602
    %v1604 = vpop.f32.mrf.mxu0
    %1605 = vdwg.mxu0
    %s1606 = scalar_lea.vmem %s9, 384
    %v1607 = vld [vmem:[%s1606] sm:$0xff]
    %v1608 = vld [vmem:[%s1606 + $0x8] sm:$0xff]
    %v1609 = vld [vmem:[%s1606 + $0x10] sm:$0xff]
    %v1610 = vld [vmem:[%s1606 + $0x18] sm:$0xff]
    %v1611 = vld [vmem:[%s1606 + $0x20] sm:$0xff]
    %v1612 = vld [vmem:[%s1606 + $0x28] sm:$0xff]
    %v1613 = vld [vmem:[%s1606 + $0x30] sm:$0xff]
    %v1614 = vld [vmem:[%s1606 + $0x38] sm:$0xff]
    %v1615 = vld [vmem:[%s1606 + $0x40] sm:$0xff]
    %v1616 = vld [vmem:[%s1606 + $0x48] sm:$0xff]
    %v1617 = vld [vmem:[%s1606 + $0x50] sm:$0xff]
    %v1618 = vld [vmem:[%s1606 + $0x58] sm:$0xff]
    %v1619 = vld [vmem:[%s1606 + $0x60] sm:$0xff]
    %v1620 = vld [vmem:[%s1606 + $0x68] sm:$0xff]
    %v1621 = vld [vmem:[%s1606 + $0x70] sm:$0xff]
    %v1622 = vld [vmem:[%s1606 + $0x78] sm:$0xff]
    %1623 = vmatprep.subr.mxu0 0.0
    %1624 = vmatpush1.msra.mxu0 %v1622
    %1625 = vmatprep.subr.mxu0 0.0
    %1626 = vmatpush1.msra.mxu0 %v1621
    %1627 = vmatprep.subr.mxu0 0.0
    %1628 = vmatpush1.msra.mxu0 %v1620
    %1629 = vmatprep.subr.mxu0 0.0
    %1630 = vmatpush1.msra.mxu0 %v1619
    %1631 = vmatprep.subr.mxu0 0.0
    %1632 = vmatpush1.msra.mxu0 %v1618
    %1633 = vmatprep.subr.mxu0 0.0
    %1634 = vmatpush1.msra.mxu0 %v1617
    %1635 = vmatprep.subr.mxu0 0.0
    %1636 = vmatpush1.msra.mxu0 %v1616
    %1637 = vmatprep.subr.mxu0 0.0
    %1638 = vmatpush1.msra.mxu0 %v1615
    %1639 = vmatprep.subr.mxu0 0.0
    %1640 = vmatpush1.msra.mxu0 %v1614
    %1641 = vmatprep.subr.mxu0 0.0
    %1642 = vmatpush1.msra.mxu0 %v1613
    %1643 = vmatprep.subr.mxu0 0.0
    %1644 = vmatpush1.msra.mxu0 %v1612
    %1645 = vmatprep.subr.mxu0 0.0
    %1646 = vmatpush1.msra.mxu0 %v1611
    %1647 = vmatprep.subr.mxu0 0.0
    %1648 = vmatpush1.msra.mxu0 %v1610
    %1649 = vmatprep.subr.mxu0 0.0
    %1650 = vmatpush1.msra.mxu0 %v1609
    %1651 = vmatprep.subr.mxu0 0.0
    %1652 = vmatpush1.msra.mxu0 %v1608
    %1653 = vmatprep.subr.mxu0 0.0
    %1654 = vmatpush1.msra.mxu0 %v1607
    %1655 = vmatprep.subr.mxu0 0.0
    %1656 = vmatpush2.msra.mxu0 0.0
    %1657 = vmatprep.subr.mxu0 0.0
    %1658 = vmatpush2.msra.mxu0 0.0
    %1659 = vmatprep.subr.mxu0 0.0
    %1660 = vmatpush2.msra.mxu0 0.0
    %1661 = vmatprep.subr.mxu0 0.0
    %1662 = vmatpush2.msra.mxu0 0.0
    %1663 = vmatprep.subr.mxu0 0.0
    %1664 = vmatpush2.msra.mxu0 0.0
    %1665 = vmatprep.subr.mxu0 0.0
    %1666 = vmatpush2.msra.mxu0 0.0
    %1667 = vmatprep.subr.mxu0 0.0
    %1668 = vmatpush2.msra.mxu0 0.0
    %1669 = vmatprep.subr.mxu0 0.0
    %1670 = vmatpush2.msra.mxu0 0.0
    %1671 = vmatprep.subr.mxu0 0.0
    %1672 = vmatpush2.msra.mxu0 0.0
    %1673 = vmatprep.subr.mxu0 0.0
    %1674 = vmatpush2.msra.mxu0 0.0
    %1675 = vmatprep.subr.mxu0 0.0
    %1676 = vmatpush2.msra.mxu0 0.0
    %1677 = vmatprep.subr.mxu0 0.0
    %1678 = vmatpush2.msra.mxu0 0.0
    %1679 = vmatprep.subr.mxu0 0.0
    %1680 = vmatpush2.msra.mxu0 0.0
    %1681 = vmatprep.subr.mxu0 0.0
    %1682 = vmatpush2.msra.mxu0 0.0
    %1683 = vmatprep.subr.mxu0 0.0
    %1684 = vmatpush2.msra.mxu0 0.0
    %1685 = vmatprep.subr.mxu0 0.0
    %1686 = vmatpush2.msra.mxu0 0.0
    %1687 = vmatprep.mubr.f32.mxu0 0.0
    %1688 = vmatmul.mubr.f32.gmra.mxu0 %v1345
    %v1689 = vpop.f32.mrf.mxu0
    %v1690 = vadd.f32 0.0, %v1689
    %v1691 = vpop.f32.mrf.mxu0
    %1692 = vdwg.mxu0
    %s1693 = scalar_lea.vmem %s9, 512
    %v1694 = vld [vmem:[%s1693] sm:$0xff]
    %v1695 = vld [vmem:[%s1693 + $0x8] sm:$0xff]
    %v1696 = vld [vmem:[%s1693 + $0x10] sm:$0xff]
    %v1697 = vld [vmem:[%s1693 + $0x18] sm:$0xff]
    %v1698 = vld [vmem:[%s1693 + $0x20] sm:$0xff]
    %v1699 = vld [vmem:[%s1693 + $0x28] sm:$0xff]
    %v1700 = vld [vmem:[%s1693 + $0x30] sm:$0xff]
    %v1701 = vld [vmem:[%s1693 + $0x38] sm:$0xff]
    %v1702 = vld [vmem:[%s1693 + $0x40] sm:$0xff]
    %v1703 = vld [vmem:[%s1693 + $0x48] sm:$0xff]
    %v1704 = vld [vmem:[%s1693 + $0x50] sm:$0xff]
    %v1705 = vld [vmem:[%s1693 + $0x58] sm:$0xff]
    %v1706 = vld [vmem:[%s1693 + $0x60] sm:$0xff]
    %v1707 = vld [vmem:[%s1693 + $0x68] sm:$0xff]
    %v1708 = vld [vmem:[%s1693 + $0x70] sm:$0xff]
    %v1709 = vld [vmem:[%s1693 + $0x78] sm:$0xff]
    %1710 = vmatprep.subr.mxu0 0.0
    %1711 = vmatpush1.msra.mxu0 %v1709
    %1712 = vmatprep.subr.mxu0 0.0
    %1713 = vmatpush1.msra.mxu0 %v1708
    %1714 = vmatprep.subr.mxu0 0.0
    %1715 = vmatpush1.msra.mxu0 %v1707
    %1716 = vmatprep.subr.mxu0 0.0
    %1717 = vmatpush1.msra.mxu0 %v1706
    %1718 = vmatprep.subr.mxu0 0.0
    %1719 = vmatpush1.msra.mxu0 %v1705
    %1720 = vmatprep.subr.mxu0 0.0
    %1721 = vmatpush1.msra.mxu0 %v1704
    %1722 = vmatprep.subr.mxu0 0.0
    %1723 = vmatpush1.msra.mxu0 %v1703
    %1724 = vmatprep.subr.mxu0 0.0
    %1725 = vmatpush1.msra.mxu0 %v1702
    %1726 = vmatprep.subr.mxu0 0.0
    %1727 = vmatpush1.msra.mxu0 %v1701
    %1728 = vmatprep.subr.mxu0 0.0
    %1729 = vmatpush1.msra.mxu0 %v1700
    %1730 = vmatprep.subr.mxu0 0.0
    %1731 = vmatpush1.msra.mxu0 %v1699
    %1732 = vmatprep.subr.mxu0 0.0
    %1733 = vmatpush1.msra.mxu0 %v1698
    %1734 = vmatprep.subr.mxu0 0.0
    %1735 = vmatpush1.msra.mxu0 %v1697
    %1736 = vmatprep.subr.mxu0 0.0
    %1737 = vmatpush1.msra.mxu0 %v1696
    %1738 = vmatprep.subr.mxu0 0.0
    %1739 = vmatpush1.msra.mxu0 %v1695
    %1740 = vmatprep.subr.mxu0 0.0
    %1741 = vmatpush1.msra.mxu0 %v1694
    %1742 = vmatprep.subr.mxu0 0.0
    %1743 = vmatpush2.msra.mxu0 0.0
    %1744 = vmatprep.subr.mxu0 0.0
    %1745 = vmatpush2.msra.mxu0 0.0
    %1746 = vmatprep.subr.mxu0 0.0
    %1747 = vmatpush2.msra.mxu0 0.0
    %1748 = vmatprep.subr.mxu0 0.0
    %1749 = vmatpush2.msra.mxu0 0.0
    %1750 = vmatprep.subr.mxu0 0.0
    %1751 = vmatpush2.msra.mxu0 0.0
    %1752 = vmatprep.subr.mxu0 0.0
    %1753 = vmatpush2.msra.mxu0 0.0
    %1754 = vmatprep.subr.mxu0 0.0
    %1755 = vmatpush2.msra.mxu0 0.0
    %1756 = vmatprep.subr.mxu0 0.0
    %1757 = vmatpush2.msra.mxu0 0.0
    %1758 = vmatprep.subr.mxu0 0.0
    %1759 = vmatpush2.msra.mxu0 0.0
    %1760 = vmatprep.subr.mxu0 0.0
    %1761 = vmatpush2.msra.mxu0 0.0
    %1762 = vmatprep.subr.mxu0 0.0
    %1763 = vmatpush2.msra.mxu0 0.0
    %1764 = vmatprep.subr.mxu0 0.0
    %1765 = vmatpush2.msra.mxu0 0.0
    %1766 = vmatprep.subr.mxu0 0.0
    %1767 = vmatpush2.msra.mxu0 0.0
    %1768 = vmatprep.subr.mxu0 0.0
    %1769 = vmatpush2.msra.mxu0 0.0
    %1770 = vmatprep.subr.mxu0 0.0
    %1771 = vmatpush2.msra.mxu0 0.0
    %1772 = vmatprep.subr.mxu0 0.0
    %1773 = vmatpush2.msra.mxu0 0.0
    %1774 = vmatprep.mubr.f32.mxu0 0.0
    %1775 = vmatmul.mubr.f32.gmra.mxu0 %v1345
    %v1776 = vpop.f32.mrf.mxu0
    %v1777 = vadd.f32 0.0, %v1776
    %v1778 = vpop.f32.mrf.mxu0
    %1779 = vdwg.mxu0
    %s1780 = scalar_lea.vmem %s9, 640
    %v1781 = vld [vmem:[%s1780] sm:$0xff]
    %v1782 = vld [vmem:[%s1780 + $0x8] sm:$0xff]
    %v1783 = vld [vmem:[%s1780 + $0x10] sm:$0xff]
    %v1784 = vld [vmem:[%s1780 + $0x18] sm:$0xff]
    %v1785 = vld [vmem:[%s1780 + $0x20] sm:$0xff]
    %v1786 = vld [vmem:[%s1780 + $0x28] sm:$0xff]
    %v1787 = vld [vmem:[%s1780 + $0x30] sm:$0xff]
    %v1788 = vld [vmem:[%s1780 + $0x38] sm:$0xff]
    %v1789 = vld [vmem:[%s1780 + $0x40] sm:$0xff]
    %v1790 = vld [vmem:[%s1780 + $0x48] sm:$0xff]
    %v1791 = vld [vmem:[%s1780 + $0x50] sm:$0xff]
    %v1792 = vld [vmem:[%s1780 + $0x58] sm:$0xff]
    %v1793 = vld [vmem:[%s1780 + $0x60] sm:$0xff]
    %v1794 = vld [vmem:[%s1780 + $0x68] sm:$0xff]
    %v1795 = vld [vmem:[%s1780 + $0x70] sm:$0xff]
    %v1796 = vld [vmem:[%s1780 + $0x78] sm:$0xff]
    %1797 = vmatprep.subr.mxu0 0.0
    %1798 = vmatpush1.msra.mxu0 %v1796
    %1799 = vmatprep.subr.mxu0 0.0
    %1800 = vmatpush1.msra.mxu0 %v1795
    %1801 = vmatprep.subr.mxu0 0.0
    %1802 = vmatpush1.msra.mxu0 %v1794
    %1803 = vmatprep.subr.mxu0 0.0
    %1804 = vmatpush1.msra.mxu0 %v1793
    %1805 = vmatprep.subr.mxu0 0.0
    %1806 = vmatpush1.msra.mxu0 %v1792
    %1807 = vmatprep.subr.mxu0 0.0
    %1808 = vmatpush1.msra.mxu0 %v1791
    %1809 = vmatprep.subr.mxu0 0.0
    %1810 = vmatpush1.msra.mxu0 %v1790
    %1811 = vmatprep.subr.mxu0 0.0
    %1812 = vmatpush1.msra.mxu0 %v1789
    %1813 = vmatprep.subr.mxu0 0.0
    %1814 = vmatpush1.msra.mxu0 %v1788
    %1815 = vmatprep.subr.mxu0 0.0
    %1816 = vmatpush1.msra.mxu0 %v1787
    %1817 = vmatprep.subr.mxu0 0.0
    %1818 = vmatpush1.msra.mxu0 %v1786
    %1819 = vmatprep.subr.mxu0 0.0
    %1820 = vmatpush1.msra.mxu0 %v1785
    %1821 = vmatprep.subr.mxu0 0.0
    %1822 = vmatpush1.msra.mxu0 %v1784
    %1823 = vmatprep.subr.mxu0 0.0
    %1824 = vmatpush1.msra.mxu0 %v1783
    %1825 = vmatprep.subr.mxu0 0.0
    %1826 = vmatpush1.msra.mxu0 %v1782
    %1827 = vmatprep.subr.mxu0 0.0
    %1828 = vmatpush1.msra.mxu0 %v1781
    %1829 = vmatprep.subr.mxu0 0.0
    %1830 = vmatpush2.msra.mxu0 0.0
    %1831 = vmatprep.subr.mxu0 0.0
    %1832 = vmatpush2.msra.mxu0 0.0
    %1833 = vmatprep.subr.mxu0 0.0
    %1834 = vmatpush2.msra.mxu0 0.0
    %1835 = vmatprep.subr.mxu0 0.0
    %1836 = vmatpush2.msra.mxu0 0.0
    %1837 = vmatprep.subr.mxu0 0.0
    %1838 = vmatpush2.msra.mxu0 0.0
    %1839 = vmatprep.subr.mxu0 0.0
    %1840 = vmatpush2.msra.mxu0 0.0
    %1841 = vmatprep.subr.mxu0 0.0
    %1842 = vmatpush2.msra.mxu0 0.0
    %1843 = vmatprep.subr.mxu0 0.0
    %1844 = vmatpush2.msra.mxu0 0.0
    %1845 = vmatprep.subr.mxu0 0.0
    %1846 = vmatpush2.msra.mxu0 0.0
    %1847 = vmatprep.subr.mxu0 0.0
    %1848 = vmatpush2.msra.mxu0 0.0
    %1849 = vmatprep.subr.mxu0 0.0
    %1850 = vmatpush2.msra.mxu0 0.0
    %1851 = vmatprep.subr.mxu0 0.0
    %1852 = vmatpush2.msra.mxu0 0.0
    %1853 = vmatprep.subr.mxu0 0.0
    %1854 = vmatpush2.msra.mxu0 0.0
    %1855 = vmatprep.subr.mxu0 0.0
    %1856 = vmatpush2.msra.mxu0 0.0
    %1857 = vmatprep.subr.mxu0 0.0
    %1858 = vmatpush2.msra.mxu0 0.0
    %1859 = vmatprep.subr.mxu0 0.0
    %1860 = vmatpush2.msra.mxu0 0.0
    %1861 = vmatprep.mubr.f32.mxu0 0.0
    %1862 = vmatmul.mubr.f32.gmra.mxu0 %v1345
    %v1863 = vpop.f32.mrf.mxu0
    %v1864 = vadd.f32 0.0, %v1863
    %v1865 = vpop.f32.mrf.mxu0
    %1866 = vdwg.mxu0
    %s1867 = scalar_lea.vmem %s9, 768
    %v1868 = vld [vmem:[%s1867] sm:$0xff]
    %v1869 = vld [vmem:[%s1867 + $0x8] sm:$0xff]
    %v1870 = vld [vmem:[%s1867 + $0x10] sm:$0xff]
    %v1871 = vld [vmem:[%s1867 + $0x18] sm:$0xff]
    %v1872 = vld [vmem:[%s1867 + $0x20] sm:$0xff]
    %v1873 = vld [vmem:[%s1867 + $0x28] sm:$0xff]
    %v1874 = vld [vmem:[%s1867 + $0x30] sm:$0xff]
    %v1875 = vld [vmem:[%s1867 + $0x38] sm:$0xff]
    %v1876 = vld [vmem:[%s1867 + $0x40] sm:$0xff]
    %v1877 = vld [vmem:[%s1867 + $0x48] sm:$0xff]
    %v1878 = vld [vmem:[%s1867 + $0x50] sm:$0xff]
    %v1879 = vld [vmem:[%s1867 + $0x58] sm:$0xff]
    %v1880 = vld [vmem:[%s1867 + $0x60] sm:$0xff]
    %v1881 = vld [vmem:[%s1867 + $0x68] sm:$0xff]
    %v1882 = vld [vmem:[%s1867 + $0x70] sm:$0xff]
    %v1883 = vld [vmem:[%s1867 + $0x78] sm:$0xff]
    %1884 = vmatprep.subr.mxu0 0.0
    %1885 = vmatpush1.msra.mxu0 %v1883
    %1886 = vmatprep.subr.mxu0 0.0
    %1887 = vmatpush1.msra.mxu0 %v1882
    %1888 = vmatprep.subr.mxu0 0.0
    %1889 = vmatpush1.msra.mxu0 %v1881
    %1890 = vmatprep.subr.mxu0 0.0
    %1891 = vmatpush1.msra.mxu0 %v1880
    %1892 = vmatprep.subr.mxu0 0.0
    %1893 = vmatpush1.msra.mxu0 %v1879
    %1894 = vmatprep.subr.mxu0 0.0
    %1895 = vmatpush1.msra.mxu0 %v1878
    %1896 = vmatprep.subr.mxu0 0.0
    %1897 = vmatpush1.msra.mxu0 %v1877
    %1898 = vmatprep.subr.mxu0 0.0
    %1899 = vmatpush1.msra.mxu0 %v1876
    %1900 = vmatprep.subr.mxu0 0.0
    %1901 = vmatpush1.msra.mxu0 %v1875
    %1902 = vmatprep.subr.mxu0 0.0
    %1903 = vmatpush1.msra.mxu0 %v1874
    %1904 = vmatprep.subr.mxu0 0.0
    %1905 = vmatpush1.msra.mxu0 %v1873
    %1906 = vmatprep.subr.mxu0 0.0
    %1907 = vmatpush1.msra.mxu0 %v1872
    %1908 = vmatprep.subr.mxu0 0.0
    %1909 = vmatpush1.msra.mxu0 %v1871
    %1910 = vmatprep.subr.mxu0 0.0
    %1911 = vmatpush1.msra.mxu0 %v1870
    %1912 = vmatprep.subr.mxu0 0.0
    %1913 = vmatpush1.msra.mxu0 %v1869
    %1914 = vmatprep.subr.mxu0 0.0
    %1915 = vmatpush1.msra.mxu0 %v1868
    %1916 = vmatprep.subr.mxu0 0.0
    %1917 = vmatpush2.msra.mxu0 0.0
    %1918 = vmatprep.subr.mxu0 0.0
    %1919 = vmatpush2.msra.mxu0 0.0
    %1920 = vmatprep.subr.mxu0 0.0
    %1921 = vmatpush2.msra.mxu0 0.0
    %1922 = vmatprep.subr.mxu0 0.0
    %1923 = vmatpush2.msra.mxu0 0.0
    %1924 = vmatprep.subr.mxu0 0.0
    %1925 = vmatpush2.msra.mxu0 0.0
    %1926 = vmatprep.subr.mxu0 0.0
    %1927 = vmatpush2.msra.mxu0 0.0
    %1928 = vmatprep.subr.mxu0 0.0
    %1929 = vmatpush2.msra.mxu0 0.0
    %1930 = vmatprep.subr.mxu0 0.0
    %1931 = vmatpush2.msra.mxu0 0.0
    %1932 = vmatprep.subr.mxu0 0.0
    %1933 = vmatpush2.msra.mxu0 0.0
    %1934 = vmatprep.subr.mxu0 0.0
    %1935 = vmatpush2.msra.mxu0 0.0
    %1936 = vmatprep.subr.mxu0 0.0
    %1937 = vmatpush2.msra.mxu0 0.0
    %1938 = vmatprep.subr.mxu0 0.0
    %1939 = vmatpush2.msra.mxu0 0.0
    %1940 = vmatprep.subr.mxu0 0.0
    %1941 = vmatpush2.msra.mxu0 0.0
    %1942 = vmatprep.subr.mxu0 0.0
    %1943 = vmatpush2.msra.mxu0 0.0
    %1944 = vmatprep.subr.mxu0 0.0
    %1945 = vmatpush2.msra.mxu0 0.0
    %1946 = vmatprep.subr.mxu0 0.0
    %1947 = vmatpush2.msra.mxu0 0.0
    %1948 = vmatprep.mubr.f32.mxu0 0.0
    %1949 = vmatmul.mubr.f32.gmra.mxu0 %v1345
    %v1950 = vpop.f32.mrf.mxu0
    %v1951 = vadd.f32 0.0, %v1950
    %v1952 = vpop.f32.mrf.mxu0
    %1953 = vdwg.mxu0
    %s1954 = scalar_lea.vmem %s9, 896
    %v1955 = vld [vmem:[%s1954] sm:$0xff]
    %v1956 = vld [vmem:[%s1954 + $0x8] sm:$0xff]
    %v1957 = vld [vmem:[%s1954 + $0x10] sm:$0xff]
    %v1958 = vld [vmem:[%s1954 + $0x18] sm:$0xff]
    %v1959 = vld [vmem:[%s1954 + $0x20] sm:$0xff]
    %v1960 = vld [vmem:[%s1954 + $0x28] sm:$0xff]
    %v1961 = vld [vmem:[%s1954 + $0x30] sm:$0xff]
    %v1962 = vld [vmem:[%s1954 + $0x38] sm:$0xff]
    %v1963 = vld [vmem:[%s1954 + $0x40] sm:$0xff]
    %v1964 = vld [vmem:[%s1954 + $0x48] sm:$0xff]
    %v1965 = vld [vmem:[%s1954 + $0x50] sm:$0xff]
    %v1966 = vld [vmem:[%s1954 + $0x58] sm:$0xff]
    %v1967 = vld [vmem:[%s1954 + $0x60] sm:$0xff]
    %v1968 = vld [vmem:[%s1954 + $0x68] sm:$0xff]
    %v1969 = vld [vmem:[%s1954 + $0x70] sm:$0xff]
    %v1970 = vld [vmem:[%s1954 + $0x78] sm:$0xff]
    %1971 = vmatprep.subr.mxu0 0.0
    %1972 = vmatpush1.msra.mxu0 %v1970
    %1973 = vmatprep.subr.mxu0 0.0
    %1974 = vmatpush1.msra.mxu0 %v1969
    %1975 = vmatprep.subr.mxu0 0.0
    %1976 = vmatpush1.msra.mxu0 %v1968
    %1977 = vmatprep.subr.mxu0 0.0
    %1978 = vmatpush1.msra.mxu0 %v1967
    %1979 = vmatprep.subr.mxu0 0.0
    %1980 = vmatpush1.msra.mxu0 %v1966
    %1981 = vmatprep.subr.mxu0 0.0
    %1982 = vmatpush1.msra.mxu0 %v1965
    %1983 = vmatprep.subr.mxu0 0.0
    %1984 = vmatpush1.msra.mxu0 %v1964
    %1985 = vmatprep.subr.mxu0 0.0
    %1986 = vmatpush1.msra.mxu0 %v1963
    %1987 = vmatprep.subr.mxu0 0.0
    %1988 = vmatpush1.msra.mxu0 %v1962
    %1989 = vmatprep.subr.mxu0 0.0
    %1990 = vmatpush1.msra.mxu0 %v1961
    %1991 = vmatprep.subr.mxu0 0.0
    %1992 = vmatpush1.msra.mxu0 %v1960
    %1993 = vmatprep.subr.mxu0 0.0
    %1994 = vmatpush1.msra.mxu0 %v1959
    %1995 = vmatprep.subr.mxu0 0.0
    %1996 = vmatpush1.msra.mxu0 %v1958
    %1997 = vmatprep.subr.mxu0 0.0
    %1998 = vmatpush1.msra.mxu0 %v1957
    %1999 = vmatprep.subr.mxu0 0.0
    %2000 = vmatpush1.msra.mxu0 %v1956
    %2001 = vmatprep.subr.mxu0 0.0
    %2002 = vmatpush1.msra.mxu0 %v1955
    %2003 = vmatprep.subr.mxu0 0.0
    %2004 = vmatpush2.msra.mxu0 0.0
    %2005 = vmatprep.subr.mxu0 0.0
    %2006 = vmatpush2.msra.mxu0 0.0
    %2007 = vmatprep.subr.mxu0 0.0
    %2008 = vmatpush2.msra.mxu0 0.0
    %2009 = vmatprep.subr.mxu0 0.0
    %2010 = vmatpush2.msra.mxu0 0.0
    %2011 = vmatprep.subr.mxu0 0.0
    %2012 = vmatpush2.msra.mxu0 0.0
    %2013 = vmatprep.subr.mxu0 0.0
    %2014 = vmatpush2.msra.mxu0 0.0
    %2015 = vmatprep.subr.mxu0 0.0
    %2016 = vmatpush2.msra.mxu0 0.0
    %2017 = vmatprep.subr.mxu0 0.0
    %2018 = vmatpush2.msra.mxu0 0.0
    %2019 = vmatprep.subr.mxu0 0.0
    %2020 = vmatpush2.msra.mxu0 0.0
    %2021 = vmatprep.subr.mxu0 0.0
    %2022 = vmatpush2.msra.mxu0 0.0
    %2023 = vmatprep.subr.mxu0 0.0
    %2024 = vmatpush2.msra.mxu0 0.0
    %2025 = vmatprep.subr.mxu0 0.0
    %2026 = vmatpush2.msra.mxu0 0.0
    %2027 = vmatprep.subr.mxu0 0.0
    %2028 = vmatpush2.msra.mxu0 0.0
    %2029 = vmatprep.subr.mxu0 0.0
    %2030 = vmatpush2.msra.mxu0 0.0
    %2031 = vmatprep.subr.mxu0 0.0
    %2032 = vmatpush2.msra.mxu0 0.0
    %2033 = vmatprep.subr.mxu0 0.0
    %2034 = vmatpush2.msra.mxu0 0.0
    %2035 = vmatprep.mubr.f32.mxu0 0.0
    %2036 = vmatmul.mubr.f32.gmra.mxu0 %v1345
    %v2037 = vpop.f32.mrf.mxu0
    %v2038 = vadd.f32 0.0, %v2037
    %v2039 = vpop.f32.mrf.mxu0
    %2040 = vdwg.mxu0
    %s2041 = scalar_lea.vmem %s9, 1024
    %v2042 = vld [vmem:[%s2041] sm:$0xff]
    %v2043 = vld [vmem:[%s2041 + $0x8] sm:$0xff]
    %v2044 = vld [vmem:[%s2041 + $0x10] sm:$0xff]
    %v2045 = vld [vmem:[%s2041 + $0x18] sm:$0xff]
    %v2046 = vld [vmem:[%s2041 + $0x20] sm:$0xff]
    %v2047 = vld [vmem:[%s2041 + $0x28] sm:$0xff]
    %v2048 = vld [vmem:[%s2041 + $0x30] sm:$0xff]
    %v2049 = vld [vmem:[%s2041 + $0x38] sm:$0xff]
    %v2050 = vld [vmem:[%s2041 + $0x40] sm:$0xff]
    %v2051 = vld [vmem:[%s2041 + $0x48] sm:$0xff]
    %v2052 = vld [vmem:[%s2041 + $0x50] sm:$0xff]
    %v2053 = vld [vmem:[%s2041 + $0x58] sm:$0xff]
    %v2054 = vld [vmem:[%s2041 + $0x60] sm:$0xff]
    %v2055 = vld [vmem:[%s2041 + $0x68] sm:$0xff]
    %v2056 = vld [vmem:[%s2041 + $0x70] sm:$0xff]
    %v2057 = vld [vmem:[%s2041 + $0x78] sm:$0xff]
    %2058 = vmatprep.subr.mxu0 0.0
    %2059 = vmatpush1.msra.mxu0 %v2057
    %2060 = vmatprep.subr.mxu0 0.0
    %2061 = vmatpush1.msra.mxu0 %v2056
    %2062 = vmatprep.subr.mxu0 0.0
    %2063 = vmatpush1.msra.mxu0 %v2055
    %2064 = vmatprep.subr.mxu0 0.0
    %2065 = vmatpush1.msra.mxu0 %v2054
    %2066 = vmatprep.subr.mxu0 0.0
    %2067 = vmatpush1.msra.mxu0 %v2053
    %2068 = vmatprep.subr.mxu0 0.0
    %2069 = vmatpush1.msra.mxu0 %v2052
    %2070 = vmatprep.subr.mxu0 0.0
    %2071 = vmatpush1.msra.mxu0 %v2051
    %2072 = vmatprep.subr.mxu0 0.0
    %2073 = vmatpush1.msra.mxu0 %v2050
    %2074 = vmatprep.subr.mxu0 0.0
    %2075 = vmatpush1.msra.mxu0 %v2049
    %2076 = vmatprep.subr.mxu0 0.0
    %2077 = vmatpush1.msra.mxu0 %v2048
    %2078 = vmatprep.subr.mxu0 0.0
    %2079 = vmatpush1.msra.mxu0 %v2047
    %2080 = vmatprep.subr.mxu0 0.0
    %2081 = vmatpush1.msra.mxu0 %v2046
    %2082 = vmatprep.subr.mxu0 0.0
    %2083 = vmatpush1.msra.mxu0 %v2045
    %2084 = vmatprep.subr.mxu0 0.0
    %2085 = vmatpush1.msra.mxu0 %v2044
    %2086 = vmatprep.subr.mxu0 0.0
    %2087 = vmatpush1.msra.mxu0 %v2043
    %2088 = vmatprep.subr.mxu0 0.0
    %2089 = vmatpush1.msra.mxu0 %v2042
    %2090 = vmatprep.subr.mxu0 0.0
    %2091 = vmatpush2.msra.mxu0 0.0
    %2092 = vmatprep.subr.mxu0 0.0
    %2093 = vmatpush2.msra.mxu0 0.0
    %2094 = vmatprep.subr.mxu0 0.0
    %2095 = vmatpush2.msra.mxu0 0.0
    %2096 = vmatprep.subr.mxu0 0.0
    %2097 = vmatpush2.msra.mxu0 0.0
    %2098 = vmatprep.subr.mxu0 0.0
    %2099 = vmatpush2.msra.mxu0 0.0
    %2100 = vmatprep.subr.mxu0 0.0
    %2101 = vmatpush2.msra.mxu0 0.0
    %2102 = vmatprep.subr.mxu0 0.0
    %2103 = vmatpush2.msra.mxu0 0.0
    %2104 = vmatprep.subr.mxu0 0.0
    %2105 = vmatpush2.msra.mxu0 0.0
    %2106 = vmatprep.subr.mxu0 0.0
    %2107 = vmatpush2.msra.mxu0 0.0
    %2108 = vmatprep.subr.mxu0 0.0
    %2109 = vmatpush2.msra.mxu0 0.0
    %2110 = vmatprep.subr.mxu0 0.0
    %2111 = vmatpush2.msra.mxu0 0.0
    %2112 = vmatprep.subr.mxu0 0.0
    %2113 = vmatpush2.msra.mxu0 0.0
    %2114 = vmatprep.subr.mxu0 0.0
    %2115 = vmatpush2.msra.mxu0 0.0
    %2116 = vmatprep.subr.mxu0 0.0
    %2117 = vmatpush2.msra.mxu0 0.0
    %2118 = vmatprep.subr.mxu0 0.0
    %2119 = vmatpush2.msra.mxu0 0.0
    %2120 = vmatprep.subr.mxu0 0.0
    %2121 = vmatpush2.msra.mxu0 0.0
    %2122 = vmatprep.mubr.f32.mxu0 0.0
    %2123 = vmatmul.mubr.f32.gmra.mxu0 %v1345
    %v2124 = vpop.f32.mrf.mxu0
    %v2125 = vadd.f32 0.0, %v2124
    %v2126 = vpop.f32.mrf.mxu0
    %2127 = vdwg.mxu0
    %s2128 = scalar_lea.vmem %s2, 16
    %v2129 = vld [vmem:[%s2128] sm:$0xff]
    %v2131 = vsel %vm1121, %v2129, 0
    %2133 = vmatprep.subr.mxu0 0.0
    %2134 = vmatpush1.msra.mxu0 0.0
    %2135 = vmatprep.subr.mxu0 0.0
    %2136 = vmatpush1.msra.mxu0 0.0
    %2137 = vmatprep.subr.mxu0 0.0
    %2138 = vmatpush1.msra.mxu0 0.0
    %2139 = vmatprep.subr.mxu0 0.0
    %2140 = vmatpush1.msra.mxu0 0.0
    %2141 = vmatprep.subr.mxu0 0.0
    %2142 = vmatpush1.msra.mxu0 0.0
    %2143 = vmatprep.subr.mxu0 0.0
    %2144 = vmatpush1.msra.mxu0 0.0
    %2145 = vmatprep.subr.mxu0 0.0
    %2146 = vmatpush1.msra.mxu0 0.0
    %2147 = vmatprep.subr.mxu0 0.0
    %2148 = vmatpush1.msra.mxu0 %v2125
    %2149 = vmatprep.subr.mxu0 0.0
    %2150 = vmatpush1.msra.mxu0 %v2038
    %2151 = vmatprep.subr.mxu0 0.0
    %2152 = vmatpush1.msra.mxu0 %v1951
    %2153 = vmatprep.subr.mxu0 0.0
    %2154 = vmatpush1.msra.mxu0 %v1864
    %2155 = vmatprep.subr.mxu0 0.0
    %2156 = vmatpush1.msra.mxu0 %v1777
    %2157 = vmatprep.subr.mxu0 0.0
    %2158 = vmatpush1.msra.mxu0 %v1690
    %2159 = vmatprep.subr.mxu0 0.0
    %2160 = vmatpush1.msra.mxu0 %v1603
    %2161 = vmatprep.subr.mxu0 0.0
    %2162 = vmatpush1.msra.mxu0 %v1516
    %2163 = vmatprep.subr.mxu0 0.0
    %2164 = vmatpush1.msra.mxu0 %v1429
    %2165 = vmatprep.subr.mxu0 0.0
    %2166 = vmatpush2.msra.mxu0 0.0
    %2167 = vmatprep.subr.mxu0 0.0
    %2168 = vmatpush2.msra.mxu0 0.0
    %2169 = vmatprep.subr.mxu0 0.0
    %2170 = vmatpush2.msra.mxu0 0.0
    %2171 = vmatprep.subr.mxu0 0.0
    %2172 = vmatpush2.msra.mxu0 0.0
    %2173 = vmatprep.subr.mxu0 0.0
    %2174 = vmatpush2.msra.mxu0 0.0
    %2175 = vmatprep.subr.mxu0 0.0
    %2176 = vmatpush2.msra.mxu0 0.0
    %2177 = vmatprep.subr.mxu0 0.0
    %2178 = vmatpush2.msra.mxu0 0.0
    %2179 = vmatprep.subr.mxu0 0.0
    %2180 = vmatpush2.msra.mxu0 0.0
    %2181 = vmatprep.subr.mxu0 0.0
    %2182 = vmatpush2.msra.mxu0 0.0
    %2183 = vmatprep.subr.mxu0 0.0
    %2184 = vmatpush2.msra.mxu0 0.0
    %2185 = vmatprep.subr.mxu0 0.0
    %2186 = vmatpush2.msra.mxu0 0.0
    %2187 = vmatprep.subr.mxu0 0.0
    %2188 = vmatpush2.msra.mxu0 0.0
    %2189 = vmatprep.subr.mxu0 0.0
    %2190 = vmatpush2.msra.mxu0 0.0
    %2191 = vmatprep.subr.mxu0 0.0
    %2192 = vmatpush2.msra.mxu0 0.0
    %2193 = vmatprep.subr.mxu0 0.0
    %2194 = vmatpush2.msra.mxu0 0.0
    %2195 = vmatprep.subr.mxu0 0.0
    %2196 = vmatpush2.msra.mxu0 0.0
    %2197 = vmatprep.mubr.f32.mxu0 0.0
    %2198 = vmatmul.mubr.f32.gmra.mxu0 %v2131
    %v2199 = vpop.f32.mrf.mxu0
    %v2200 = vadd.f32 0.0, %v2199
    %v2201 = vpop.f32.mrf.mxu0
    %2202 = vdwg.mxu0
    %vm2203 = vcmask 261120
    %v2204 = vsel %vm2203, %v2200, 0.0
    %2205 = vadd.xlane.f32.xlu0 %v2204
    %v2206 = vpop.xlane.xlu0 %2205
    %v2207 = vrcp.pop 32.0
    %v2208 = vmul.f32 %v2206, %v2207
    %v2209 = vsub.f32 %v2200, %v2208
    %v2210 = vmul.f32 %v2209, %v2209
    %v2211 = vsel %vm2203, %v2210, 0.0
    %2212 = vadd.xlane.f32.xlu0 %v2211
    %v2213 = vpop.xlane.xlu0 %2212
    %v2214 = vmul.f32 %v2213, %v2207
    %v2215 = vadd.f32 %v2214, 1e-05
    %v2216 = vrsqrt.pop %v2215
    %v2217 = vmul.f32 %v828, %v2216
    %2219 = vset.pattern.permute.xlu0 6
    %2220 = vperm.xlu0 %2219, %v2217
    %v2221 = vpop.permute.xlu0 %2220
    %v2223 = vmul.f32 %v2209, %v2221
    %2224 = vset.pattern.permute.xlu0 7
    %2225 = vperm.xlu0 %2224, %v828
    %v2226 = vpop.permute.xlu0 %2225
    %v2228 = vadd.f32 %v2223, %v2226
    %vm2229 = vcmp.gt.f32.partialorder %v2228, 0.0
    %v2230 = vmul.f32 %v2228, 0.1
    %v2231 = vsel %vm2229, %v2228, %v2230
    %v2232 = vadd.f32 %v2231, %v454
    %2233 = vst.msk [vmem:[#allocation2] sm:$0xff] %vm2203, %v2232
    // Predicated region
    $region42: #{tpu_custom_call.1} parent=1 // pred_check
      _
    $region43: #{tpu_custom_call.1} parent=1 // pred_check_branch
      %2235 = sbr.rel (0) target = $region45
    $region44: #{tpu_custom_call.1} parent=1 // pred_region
      %s2237 = ssub.s32 128, 128
      %2238 = vsyncadd [#allocation3], %s2237
      %s2240 = sshll.u32 [#allocation2], 4
      %s2241 = int_to_ptr.vmem [resolvable:$true] %s2240
      %2243 = dma.vmem_to_hbm [thread:$0]  %s2241, 128, %s10, [#allocation3]
    $region45: #{tpu_custom_call.1} parent=1 // pred_fallthru
      _
    // Predicated region
    $region46: #{tpu_custom_call.1} parent=1 // pred_check
      _
    $region47: #{tpu_custom_call.1} parent=1 // pred_check_branch
      %2245 = sbr.rel (0) target = $region49
    $region48: #{tpu_custom_call.1} parent=1 // pred_region
      %2246 = dma.done [#allocation3], 128
    $region49: #{tpu_custom_call.1} parent=1 // pred_fallthru
      _
    %2247 = vsyncpa [#allocation3], 1

</llo_original>
